<compile_context>
chip_gen: v7x
topology: tpu7x:2x2x1
jax: 0.10.0
libtpu: 0.0.40
codegen_flags: <defaults>
</compile_context>

<pallas_src>
import numpy as np
import jax
import jax.numpy as jnp
from jax import lax
from jax.experimental import pallas as pl
from jax.experimental.pallas import tpu as pltpu


# ----------------------------------------------------------------------------
# 4-element sorting network (optimal, 5 compare-exchanges). Operates on a list
# of 4 lane-dense (strip, 128) slabs. The forward masks are reused in the
# backward pass to route gradients (transpose of the sort permutation).
# ----------------------------------------------------------------------------
_STAGES4 = ((0, 1), (2, 3), (0, 2), (1, 3), (1, 2))


def _sortnet4_fwd(v):
    v = list(v)
    masks = []
    for (i, j) in _STAGES4:
        a, b = v[i], v[j]
        m = a <= b
        v[i] = jnp.where(m, a, b)   # lo
        v[j] = jnp.where(m, b, a)   # hi
        masks.append(m)
    return v, masks


def _sortnet4_bwd(g, masks):
    g = list(g)
    for (i, j), m in zip(reversed(_STAGES4), reversed(masks)):
        gi, gj = g[i], g[j]
        g[i] = jnp.where(m, gi, gj)
        g[j] = jnp.where(m, gj, gi)
    return g


# ----------------------------------------------------------------------------
# Pallas kernel: per batch-tile forward MLP + analytic input gradient + loss,
# entirely on the VPU with the batch on the 128-lane axis.
# ----------------------------------------------------------------------------
def _make_kernel(d, h1, h2, c_deriv, c_gnorm, r_tile, strip, unroll):
    assert h1 == 4 and h2 == 4, "groupsort1 network hardcoded for hidden width 4"
    assert r_tile % strip == 0
    n_strips = r_tile // strip

    OFF_W1 = 0
    OFF_B1 = OFF_W1 + d * h1
    OFF_W2 = OFF_B1 + h1
    OFF_B2 = OFF_W2 + h1 * h2
    OFF_W3 = OFF_B2 + h2
    OFF_B3 = OFF_W3 + h2

    def kernel(x_ref, do_ref, ocl_ref, w_ref, loss_ref):
        # Single-vreg-per-row accumulator block, resident across the inner
        # ("arbitrary") grid axis; one block per TensorCore.
        @pl.when(pl.program_id(1) == 0)
        def _init():
            loss_ref[...] = jnp.zeros_like(loss_ref)

        # --- hoist every scalar weight out of the strip loop (one SMEM read each) ---
        w1 = [[w_ref[OFF_W1 + dd * h1 + h] for h in range(h1)] for dd in range(d)]
        b1 = [w_ref[OFF_B1 + h] for h in range(h1)]
        w2 = [[w_ref[OFF_W2 + a * h2 + b] for b in range(h2)] for a in range(h1)]
        b2 = [w_ref[OFF_B2 + h] for h in range(h2)]
        w3 = [w_ref[OFF_W3 + h] for h in range(h2)]
        b3 = w_ref[OFF_B3]

        def strip_body(s, acc):
            row0 = s * strip
            if not isinstance(row0, int):
                row0 = pl.multiple_of(row0, strip)
            rows = pl.ds(row0, strip)

            # One (strip, 128) lane-dense slab per feature (bf16 stream -> f32 compute).
            xs = [x_ref[dd, rows, :].astype(jnp.float32) for dd in range(d)]

            # ---- layer 1: z1[h] = sum_d W1[d,h]*x[d] + b1[h]  (VPU broadcast-FMA) ----
            z1 = []
            for h in range(h1):
                a_ = xs[0] * w1[0][h]
                for dd in range(1, d):
                    a_ = a_ + xs[dd] * w1[dd][h]
                z1.append(a_ + b1[h])

            s1, m1 = _sortnet4_fwd(z1)       # groupsort1 == full ascending sort

            # ---- layer 2 ----
            z2 = []
            for h in range(h2):
                a_ = s1[0] * w2[0][h]
                for a in range(1, h1):
                    a_ = a_ + s1[a] * w2[a][h]
                z2.append(a_ + b2[h])

            s2, m2 = _sortnet4_fwd(z2)

            # ---- layer 3: y = sum_h W3[h]*s2[h] + b3 ----
            y = s2[0] * w3[0]
            for h in range(1, h2):
                y = y + s2[h] * w3[h]
            y = y + b3

            # ---- analytic dy/dx: route gradients back through the sort masks ----
            g_z2 = _sortnet4_bwd([w3[h] for h in range(h2)], m2)
            g_s1 = []
            for a in range(h1):
                a_ = g_z2[0] * w2[a][0]
                for h in range(1, h2):
                    a_ = a_ + g_z2[h] * w2[a][h]
                g_s1.append(a_)
            g_z1 = _sortnet4_bwd(g_s1, m1)

            # ---- loss terms (all (strip, 128), one entry per sample) ----
            o_t = ocl_ref[0, rows, :]
            cl_t = ocl_ref[1, rows, :]
            msk = ocl_ref[2, rows, :]          # 1 for real samples, 0 for padding
            clsign = 2.0 * cl_t - 1.0
            cls_term = jnp.maximum((y - o_t) * clsign, 0.0)

            deriv_sum = None
            gsq = None
            for dd in range(d):
                gx = g_z1[0] * w1[dd][0]
                for a in range(1, h1):
                    gx = gx + g_z1[a] * w1[dd][a]
                derr = gx - do_ref[dd, rows, :].astype(jnp.float32)
                if dd == 0:
                    deriv_sum = derr * derr
                    gsq = gx * gx
                else:
                    deriv_sum = deriv_sum + derr * derr
                    gsq = gsq + gx * gx

            # Fold c_deriv into the cl multiply; skip identity multiplies at trace time.
            cl_w = cl_t if c_deriv == 1.0 else cl_t * c_deriv
            deriv_term = deriv_sum * cl_w
            gnorm_term = jnp.maximum(gsq - 1.0, 0.0)
            if c_gnorm != 1.0:
                gnorm_term = gnorm_term * c_gnorm

            partial = (cls_term + deriv_term + gnorm_term) * msk
            return acc + partial

        acc0 = jnp.zeros((strip, 128), jnp.float32)
        if n_strips == 1:
            acc = strip_body(0, acc0)
        else:
            acc = lax.fori_loop(0, n_strips, strip_body, acc0, unroll=unroll)

        loss_ref[0, :, :] = loss_ref[0, :, :] + acc

    return kernel


# ----------------------------------------------------------------------------
# Layout prep (done once) + pallas_call builder + cached-layout loss closure.
# ----------------------------------------------------------------------------
def _round_up(v, m):
    return ((v + m - 1) // m) * m


def _prepare_batch(x, o, do, cl, *, tile_rows, stream_bf16, n_cores, strip):
    n, d = x.shape
    in_dtype = jnp.bfloat16 if stream_bf16 else jnp.float32
    itemsize = 2 if stream_bf16 else 4

    nr = -(-n // 128)
    rows_per_core = _round_up(-(-nr // n_cores), strip)
    r_tile = min(_round_up(max(tile_rows, strip), strip), rows_per_core)

    # Keep the double-buffered input working set under ~20 MiB so the kernel fits
    # v7x's 64 MiB VMEM (and the explicit 32 MiB limit below) with headroom.
    per_row_bytes = (2 * d * itemsize + 3 * 4) * 128
    r_max = max(strip, ((20 << 20) // (2 * per_row_bytes)) // strip * strip)
    r_tile = max(strip, min(r_tile, r_max))

    steps = -(-rows_per_core // r_tile)
    rows_per_core = steps * r_tile
    nr_pad = n_cores * rows_per_core
    n_pad = nr_pad * 128

    pad = n_pad - n
    xp = jnp.pad(x, ((0, pad), (0, 0))) if pad else x
    dop = jnp.pad(do, ((0, pad), (0, 0))) if pad else do
    op = jnp.pad(o[:, 0], (0, pad)) if pad else o[:, 0]
    clp = jnp.pad(cl[:, 0], (0, pad)) if pad else cl[:, 0]
    msk = (jnp.arange(n_pad) < n).astype(jnp.float32)

    # Batch on the 128-lane axis: (D, NR, 128) lane-dense slabs.
    xT = jnp.transpose(xp).reshape(d, nr_pad, 128).astype(in_dtype)
    doT = jnp.transpose(dop).reshape(d, nr_pad, 128).astype(in_dtype)
    # Pack o / cl / valid-mask into one array (one DMA instead of three 1-lane ones).
    ocl = jnp.stack([op.astype(jnp.float32), clp.astype(jnp.float32), msk],
                    axis=0).reshape(3, nr_pad, 128)

    meta = dict(n=n, d=d, r_tile=r_tile, steps=steps, n_cores=n_cores, strip=strip)
    return (xT, doT, ocl), meta


def _build_loss_call(meta, h1, h2, c_deriv, c_gnorm, unroll):
    d = meta["d"]
    r_tile = meta["r_tile"]
    steps = meta["steps"]
    n_cores = meta["n_cores"]
    strip = meta["strip"]

    kernel = _make_kernel(d, h1, h2, c_deriv, c_gnorm, r_tile, strip, unroll)

    def batch_map(c, i):
        return (0, c * steps + i, 0)

    return pl.pallas_call(
        kernel,
        out_shape=jax.ShapeDtypeStruct((n_cores, strip, 128), jnp.float32),
        grid_spec=pltpu.PrefetchScalarGridSpec(
            num_scalar_prefetch=0,
            grid=(n_cores, steps),
            in_specs=[
                pl.BlockSpec((d, r_tile, 128), batch_map),            # x (transposed)
                pl.BlockSpec((d, r_tile, 128), batch_map),            # do (transposed)
                pl.BlockSpec((3, r_tile, 128), batch_map),            # packed [o; cl; mask]
                pl.BlockSpec(memory_space=pltpu.MemorySpace.SMEM),    # flat weights
            ],
            out_specs=pl.BlockSpec((1, strip, 128), lambda c, i: (c, 0, 0)),
        ),
        compiler_params=pltpu.CompilerParams(
            dimension_semantics=("parallel", "arbitrary"),
            vmem_limit_bytes=32 * 1024 * 1024),
    )


def make_objective_loss_fn(x, o, do, cl, *, tile_rows=512, stream_bf16=True,
                           c_deriv=1.0, c_gnorm=1.0, n_cores=2):
    """Returns loss_fn(weights) -> scalar loss for fixed (x, o, do, cl).

    Layout prep (transpose/pack/pad/bf16 cast) runs ONCE here; the returned
    closure reuses the cached device arrays across repeated objective evals.
    """
    strip = 16 if stream_bf16 else 8          # bf16 strips are full packed (16,128) vregs
    unroll = 1 if stream_bf16 else 2          # f32 8-row strips: unroll x2 for ILP
    (xT, doT, ocl), meta = _prepare_batch(
        x, o, do, cl, tile_rows=tile_rows, stream_bf16=stream_bf16,
        n_cores=n_cores, strip=strip)

    h1, h2 = 4, 4
    call = _build_loss_call(meta, h1, h2, float(c_deriv), float(c_gnorm), unroll)
    n = meta["n"]

    @jax.jit
    def _loss(xT_, doT_, ocl_, wflat_):
        out = call(xT_, doT_, ocl_, wflat_)
        # Final tiny cross-lane reduction + mean outside the hot loop.
        return jnp.sum(out) / n

    def loss_fn(weights):
        (w1, b1), (w2, b2), (w3, b3) = weights
        assert w1.shape == (meta["d"], h1) and w2.shape == (h1, h2) and w3.shape == (h2, 1)
        wflat = jnp.concatenate([
            w1.reshape(-1), b1.reshape(-1),
            w2.reshape(-1), b2.reshape(-1),
            w3.reshape(-1), b3.reshape(-1)]).astype(jnp.float32)
        return _loss(xT, doT, ocl, wflat)

    return loss_fn


# ----------------------------------------------------------------------------
# Pure-JAX reference: jnp.sort forward + autodiff input gradient. This checks
# both the sorting-network forward and the mask-routed analytic backward.
# ----------------------------------------------------------------------------
def _mlp_forward(weights, xb):
    (w1, b1), (w2, b2), (w3, b3) = weights
    z1 = xb @ w1 + b1
    s1 = jnp.sort(z1, axis=-1)       # groupsort1 == full sort
    z2 = s1 @ w2 + b2
    s2 = jnp.sort(z2, axis=-1)
    return s2 @ w3 + b3              # (N, 1)


def objective_loss_ref(x, o, do, cl, weights, c_deriv=1.0, c_gnorm=1.0):
    y = _mlp_forward(weights, x)
    f_scalar = lambda xi: _mlp_forward(weights, xi[None, :])[0, 0]
    dydx = jax.vmap(jax.grad(f_scalar))(x)
    clsign = 2.0 * cl - 1.0
    cls_term = jnp.maximum((y - o) * clsign, 0.0)
    derr = dydx - do
    deriv_term = jnp.sum(derr * derr, axis=-1, keepdims=True) * cl
    gsq = jnp.sum(dydx * dydx, axis=-1, keepdims=True)
    gnorm_term = jnp.maximum(gsq - 1.0, 0.0)
    return jnp.mean(cls_term + c_deriv * deriv_term + c_gnorm * gnorm_term)


def _init_linear(key, fan_in, fan_out):
    # Deterministic, PyTorch-Linear-style uniform(+-1/sqrt(fan_in)) init.
    kw, kb = jax.random.split(key)
    bound = 1.0 / float(np.sqrt(fan_in))
    w = jax.random.uniform(kw, (fan_in, fan_out), jnp.float32, -bound, bound)
    b = jax.random.uniform(kb, (1, fan_out), jnp.float32, -bound, bound)
    return w, b


if __name__ == "__main__":
    # Tabular MLP: hidden_layers = [4, 4], output size 1. N is deliberately NOT a
    # multiple of 128 so the padding/masking, the always-2 core split, the inner
    # strip loop and the multi-step accumulation axis are all exercised.
    N, D, H1, H2 = 6000, 8, 4, 4
    key = jax.random.PRNGKey(0)
    kx, ko, kdo, kcl, k1, k2, k3 = jax.random.split(key, 7)

    x = jax.random.normal(kx, (N, D), jnp.float32)
    cl = (jax.random.uniform(kcl, (N, 1)) < 0.5).astype(jnp.float32)   # class labels {0,1}
    o = jnp.abs(jax.random.normal(ko, (N, 1))) * cl                    # sqJ targets (>=0, 0 if feasible)
    do = jax.random.normal(kdo, (N, D), jnp.float32)
    do = do / (jnp.linalg.norm(do, axis=-1, keepdims=True) + 1e-6)     # unit sqJ-gradient targets

    weights = (
        _init_linear(k1, D, H1),
        _init_linear(k2, H1, H2),
        _init_linear(k3, H2, 1),
    )

    ref = float(objective_loss_ref(x, o, do, cl, weights))

    # Faithful f32 path, small tile (exercises the 2-step accumulation axis and
    # the unrolled in-kernel strip loop).
    loss_f32_fn = make_objective_loss_fn(x, o, do, cl, tile_rows=16, stream_bf16=False)
    got = float(jax.block_until_ready(loss_f32_fn(weights)))
    assert abs(got - ref) <= 1e-4 + 1e-3 * abs(ref), (got, ref)

    # Default path: bf16 streaming, large lane-dense tile, cached layouts.
    loss_fn = make_objective_loss_fn(x, o, do, cl)   # tile_rows=512, stream_bf16=True
    got_bf = float(jax.block_until_ready(loss_fn(weights)))
    got_bf2 = float(jax.block_until_ready(loss_fn(weights)))   # re-eval reuses cached layout
    assert abs(got_bf - ref) <= 1e-2 + 3e-2 * abs(ref), (got_bf, ref)
    assert got_bf == got_bf2, (got_bf, got_bf2)

    print("KERNEL_OK")
</pallas_src>

<mosaic_0001>
module attributes {stable_mosaic.version = 11 : i64} {
  func.func @kernel(%arg0: i32, %arg1: i32, %arg2: memref<8x16x128xf32, #tpu.memory_space<vmem>>, %arg3: memref<8x16x128xf32, #tpu.memory_space<vmem>>, %arg4: memref<3x16x128xf32, #tpu.memory_space<vmem>>, %arg5: memref<61xf32, #tpu.memory_space<smem>>, %arg6: memref<1x8x128xf32, #tpu.memory_space<vmem>>) attributes {dimension_semantics = [#tpu.dimension_semantics<parallel>, #tpu.dimension_semantics<arbitrary>], iteration_bounds = array<i64: 2, 2>, scalar_prefetch = 0 : i64, scratch_operands = 0 : i64, tpu.core_type = #tpu.core_type<tc>, window_params = [{transform_indices = @transform_0, window_bounds = array<i64: 8, 16, 128>}, {transform_indices = @transform_1, window_bounds = array<i64: 8, 16, 128>}, {transform_indices = @transform_2, window_bounds = array<i64: 3, 16, 128>}, {transform_indices = @transform_3, window_bounds = array<i64: 61>}, {transform_indices = @transform_4, window_bounds = array<i64: 1, 8, 128>}]} {
    %c0_i32 = arith.constant 0 : i32
    %0 = arith.cmpi eq, %arg1, %c0_i32 : i32
    %1 = arith.extui %0 : i1 to i32
    %c0_i32_0 = arith.constant 0 : i32
    %2 = arith.cmpi ne, %1, %c0_i32_0 : i32
    scf.if %2 {
      %cst_95 = arith.constant 0.000000e+00 : f32
      %1009 = vector.broadcast %cst_95 : f32 to vector<1x8x128xf32>
      %c0_96 = arith.constant 0 : index
      %c0_97 = arith.constant 0 : index
      %c0_98 = arith.constant 0 : index
      %1010 = vector.load %arg6[%c0_96, %c0_97, %c0_98] : memref<1x8x128xf32, #tpu.memory_space<vmem>>, vector<1x8x128xf32>
      tpu.vector_store %arg6[%c0_96, %c0_97, %c0_98], %1009 {strides = array<i32>} : memref<1x8x128xf32, #tpu.memory_space<vmem>>, vector<1x8x128xf32>,
    } else {
    }
    %c0 = arith.constant 0 : index
    %3 = memref.load %arg5[%c0] : memref<61xf32, #tpu.memory_space<smem>>
    %c1 = arith.constant 1 : index
    %4 = memref.load %arg5[%c1] : memref<61xf32, #tpu.memory_space<smem>>
    %c2 = arith.constant 2 : index
    %5 = memref.load %arg5[%c2] : memref<61xf32, #tpu.memory_space<smem>>
    %c3 = arith.constant 3 : index
    %6 = memref.load %arg5[%c3] : memref<61xf32, #tpu.memory_space<smem>>
    %c4 = arith.constant 4 : index
    %7 = memref.load %arg5[%c4] : memref<61xf32, #tpu.memory_space<smem>>
    %c5 = arith.constant 5 : index
    %8 = memref.load %arg5[%c5] : memref<61xf32, #tpu.memory_space<smem>>
    %c6 = arith.constant 6 : index
    %9 = memref.load %arg5[%c6] : memref<61xf32, #tpu.memory_space<smem>>
    %c7 = arith.constant 7 : index
    %10 = memref.load %arg5[%c7] : memref<61xf32, #tpu.memory_space<smem>>
    %c8 = arith.constant 8 : index
    %11 = memref.load %arg5[%c8] : memref<61xf32, #tpu.memory_space<smem>>
    %c9 = arith.constant 9 : index
    %12 = memref.load %arg5[%c9] : memref<61xf32, #tpu.memory_space<smem>>
    %c10 = arith.constant 10 : index
    %13 = memref.load %arg5[%c10] : memref<61xf32, #tpu.memory_space<smem>>
    %c11 = arith.constant 11 : index
    %14 = memref.load %arg5[%c11] : memref<61xf32, #tpu.memory_space<smem>>
    %c12 = arith.constant 12 : index
    %15 = memref.load %arg5[%c12] : memref<61xf32, #tpu.memory_space<smem>>
    %c13 = arith.constant 13 : index
    %16 = memref.load %arg5[%c13] : memref<61xf32, #tpu.memory_space<smem>>
    %c14 = arith.constant 14 : index
    %17 = memref.load %arg5[%c14] : memref<61xf32, #tpu.memory_space<smem>>
    %c15 = arith.constant 15 : index
    %18 = memref.load %arg5[%c15] : memref<61xf32, #tpu.memory_space<smem>>
    %c16 = arith.constant 16 : index
    %19 = memref.load %arg5[%c16] : memref<61xf32, #tpu.memory_space<smem>>
    %c17 = arith.constant 17 : index
    %20 = memref.load %arg5[%c17] : memref<61xf32, #tpu.memory_space<smem>>
    %c18 = arith.constant 18 : index
    %21 = memref.load %arg5[%c18] : memref<61xf32, #tpu.memory_space<smem>>
    %c19 = arith.constant 19 : index
    %22 = memref.load %arg5[%c19] : memref<61xf32, #tpu.memory_space<smem>>
    %c20 = arith.constant 20 : index
    %23 = memref.load %arg5[%c20] : memref<61xf32, #tpu.memory_space<smem>>
    %c21 = arith.constant 21 : index
    %24 = memref.load %arg5[%c21] : memref<61xf32, #tpu.memory_space<smem>>
    %c22 = arith.constant 22 : index
    %25 = memref.load %arg5[%c22] : memref<61xf32, #tpu.memory_space<smem>>
    %c23 = arith.constant 23 : index
    %26 = memref.load %arg5[%c23] : memref<61xf32, #tpu.memory_space<smem>>
    %c24 = arith.constant 24 : index
    %27 = memref.load %arg5[%c24] : memref<61xf32, #tpu.memory_space<smem>>
    %c25 = arith.constant 25 : index
    %28 = memref.load %arg5[%c25] : memref<61xf32, #tpu.memory_space<smem>>
    %c26 = arith.constant 26 : index
    %29 = memref.load %arg5[%c26] : memref<61xf32, #tpu.memory_space<smem>>
    %c27 = arith.constant 27 : index
    %30 = memref.load %arg5[%c27] : memref<61xf32, #tpu.memory_space<smem>>
    %c28 = arith.constant 28 : index
    %31 = memref.load %arg5[%c28] : memref<61xf32, #tpu.memory_space<smem>>
    %c29 = arith.constant 29 : index
    %32 = memref.load %arg5[%c29] : memref<61xf32, #tpu.memory_space<smem>>
    %c30 = arith.constant 30 : index
    %33 = memref.load %arg5[%c30] : memref<61xf32, #tpu.memory_space<smem>>
    %c31 = arith.constant 31 : index
    %34 = memref.load %arg5[%c31] : memref<61xf32, #tpu.memory_space<smem>>
    %c32 = arith.constant 32 : index
    %35 = memref.load %arg5[%c32] : memref<61xf32, #tpu.memory_space<smem>>
    %c33 = arith.constant 33 : index
    %36 = memref.load %arg5[%c33] : memref<61xf32, #tpu.memory_space<smem>>
    %c34 = arith.constant 34 : index
    %37 = memref.load %arg5[%c34] : memref<61xf32, #tpu.memory_space<smem>>
    %c35 = arith.constant 35 : index
    %38 = memref.load %arg5[%c35] : memref<61xf32, #tpu.memory_space<smem>>
    %c36 = arith.constant 36 : index
    %39 = memref.load %arg5[%c36] : memref<61xf32, #tpu.memory_space<smem>>
    %c37 = arith.constant 37 : index
    %40 = memref.load %arg5[%c37] : memref<61xf32, #tpu.memory_space<smem>>
    %c38 = arith.constant 38 : index
    %41 = memref.load %arg5[%c38] : memref<61xf32, #tpu.memory_space<smem>>
    %c39 = arith.constant 39 : index
    %42 = memref.load %arg5[%c39] : memref<61xf32, #tpu.memory_space<smem>>
    %c40 = arith.constant 40 : index
    %43 = memref.load %arg5[%c40] : memref<61xf32, #tpu.memory_space<smem>>
    %c41 = arith.constant 41 : index
    %44 = memref.load %arg5[%c41] : memref<61xf32, #tpu.memory_space<smem>>
    %c42 = arith.constant 42 : index
    %45 = memref.load %arg5[%c42] : memref<61xf32, #tpu.memory_space<smem>>
    %c43 = arith.constant 43 : index
    %46 = memref.load %arg5[%c43] : memref<61xf32, #tpu.memory_space<smem>>
    %c44 = arith.constant 44 : index
    %47 = memref.load %arg5[%c44] : memref<61xf32, #tpu.memory_space<smem>>
    %c45 = arith.constant 45 : index
    %48 = memref.load %arg5[%c45] : memref<61xf32, #tpu.memory_space<smem>>
    %c46 = arith.constant 46 : index
    %49 = memref.load %arg5[%c46] : memref<61xf32, #tpu.memory_space<smem>>
    %c47 = arith.constant 47 : index
    %50 = memref.load %arg5[%c47] : memref<61xf32, #tpu.memory_space<smem>>
    %c48 = arith.constant 48 : index
    %51 = memref.load %arg5[%c48] : memref<61xf32, #tpu.memory_space<smem>>
    %c49 = arith.constant 49 : index
    %52 = memref.load %arg5[%c49] : memref<61xf32, #tpu.memory_space<smem>>
    %c50 = arith.constant 50 : index
    %53 = memref.load %arg5[%c50] : memref<61xf32, #tpu.memory_space<smem>>
    %c51 = arith.constant 51 : index
    %54 = memref.load %arg5[%c51] : memref<61xf32, #tpu.memory_space<smem>>
    %c52 = arith.constant 52 : index
    %55 = memref.load %arg5[%c52] : memref<61xf32, #tpu.memory_space<smem>>
    %c53 = arith.constant 53 : index
    %56 = memref.load %arg5[%c53] : memref<61xf32, #tpu.memory_space<smem>>
    %c54 = arith.constant 54 : index
    %57 = memref.load %arg5[%c54] : memref<61xf32, #tpu.memory_space<smem>>
    %c55 = arith.constant 55 : index
    %58 = memref.load %arg5[%c55] : memref<61xf32, #tpu.memory_space<smem>>
    %c56 = arith.constant 56 : index
    %59 = memref.load %arg5[%c56] : memref<61xf32, #tpu.memory_space<smem>>
    %c57 = arith.constant 57 : index
    %60 = memref.load %arg5[%c57] : memref<61xf32, #tpu.memory_space<smem>>
    %c58 = arith.constant 58 : index
    %61 = memref.load %arg5[%c58] : memref<61xf32, #tpu.memory_space<smem>>
    %c59 = arith.constant 59 : index
    %62 = memref.load %arg5[%c59] : memref<61xf32, #tpu.memory_space<smem>>
    %c60 = arith.constant 60 : index
    %63 = memref.load %arg5[%c60] : memref<61xf32, #tpu.memory_space<smem>>
    %cst = arith.constant 0.000000e+00 : f32
    %64 = vector.broadcast %cst : f32 to vector<8x128xf32>
    %c0_i32_1 = arith.constant 0 : i32
    %c8_i32 = arith.constant 8 : i32
    %65 = arith.muli %c0_i32_1, %c8_i32 : i32
    %66 = tpu.assume_multiple %65, 8 : i32
    %c0_2 = arith.constant 0 : index
    %67 = arith.index_cast %66 : i32 to index
    %c0_3 = arith.constant 0 : index
    %68 = vector.load %arg2[%c0_2, %67, %c0_3] : memref<8x16x128xf32, #tpu.memory_space<vmem>>, vector<1x8x128xf32>
    %69 = vector.shape_cast %68 : vector<1x8x128xf32> to vector<8x128xf32>
    %c1_4 = arith.constant 1 : index
    %70 = arith.index_cast %66 : i32 to index
    %c0_5 = arith.constant 0 : index
    %71 = vector.load %arg2[%c1_4, %70, %c0_5] : memref<8x16x128xf32, #tpu.memory_space<vmem>>, vector<1x8x128xf32>
    %72 = vector.shape_cast %71 : vector<1x8x128xf32> to vector<8x128xf32>
    %c2_6 = arith.constant 2 : index
    %73 = arith.index_cast %66 : i32 to index
    %c0_7 = arith.constant 0 : index
    %74 = vector.load %arg2[%c2_6, %73, %c0_7] : memref<8x16x128xf32, #tpu.memory_space<vmem>>, vector<1x8x128xf32>
    %75 = vector.shape_cast %74 : vector<1x8x128xf32> to vector<8x128xf32>
    %c3_8 = arith.constant 3 : index
    %76 = arith.index_cast %66 : i32 to index
    %c0_9 = arith.constant 0 : index
    %77 = vector.load %arg2[%c3_8, %76, %c0_9] : memref<8x16x128xf32, #tpu.memory_space<vmem>>, vector<1x8x128xf32>
    %78 = vector.shape_cast %77 : vector<1x8x128xf32> to vector<8x128xf32>
    %c4_10 = arith.constant 4 : index
    %79 = arith.index_cast %66 : i32 to index
    %c0_11 = arith.constant 0 : index
    %80 = vector.load %arg2[%c4_10, %79, %c0_11] : memref<8x16x128xf32, #tpu.memory_space<vmem>>, vector<1x8x128xf32>
    %81 = vector.shape_cast %80 : vector<1x8x128xf32> to vector<8x128xf32>
    %c5_12 = arith.constant 5 : index
    %82 = arith.index_cast %66 : i32 to index
    %c0_13 = arith.constant 0 : index
    %83 = vector.load %arg2[%c5_12, %82, %c0_13] : memref<8x16x128xf32, #tpu.memory_space<vmem>>, vector<1x8x128xf32>
    %84 = vector.shape_cast %83 : vector<1x8x128xf32> to vector<8x128xf32>
    %c6_14 = arith.constant 6 : index
    %85 = arith.index_cast %66 : i32 to index
    %c0_15 = arith.constant 0 : index
    %86 = vector.load %arg2[%c6_14, %85, %c0_15] : memref<8x16x128xf32, #tpu.memory_space<vmem>>, vector<1x8x128xf32>
    %87 = vector.shape_cast %86 : vector<1x8x128xf32> to vector<8x128xf32>
    %c7_16 = arith.constant 7 : index
    %88 = arith.index_cast %66 : i32 to index
    %c0_17 = arith.constant 0 : index
    %89 = vector.load %arg2[%c7_16, %88, %c0_17] : memref<8x16x128xf32, #tpu.memory_space<vmem>>, vector<1x8x128xf32>
    %90 = vector.shape_cast %89 : vector<1x8x128xf32> to vector<8x128xf32>
    %91 = vector.broadcast %3 : f32 to vector<8x128xf32>
    %92 = arith.mulf %69, %91 : vector<8x128xf32>
    %93 = vector.broadcast %7 : f32 to vector<8x128xf32>
    %94 = arith.mulf %72, %93 : vector<8x128xf32>
    %95 = arith.addf %92, %94 : vector<8x128xf32>
    %96 = vector.broadcast %11 : f32 to vector<8x128xf32>
    %97 = arith.mulf %75, %96 : vector<8x128xf32>
    %98 = arith.addf %95, %97 : vector<8x128xf32>
    %99 = vector.broadcast %15 : f32 to vector<8x128xf32>
    %100 = arith.mulf %78, %99 : vector<8x128xf32>
    %101 = arith.addf %98, %100 : vector<8x128xf32>
    %102 = vector.broadcast %19 : f32 to vector<8x128xf32>
    %103 = arith.mulf %81, %102 : vector<8x128xf32>
    %104 = arith.addf %101, %103 : vector<8x128xf32>
    %105 = vector.broadcast %23 : f32 to vector<8x128xf32>
    %106 = arith.mulf %84, %105 : vector<8x128xf32>
    %107 = arith.addf %104, %106 : vector<8x128xf32>
    %108 = vector.broadcast %27 : f32 to vector<8x128xf32>
    %109 = arith.mulf %87, %108 : vector<8x128xf32>
    %110 = arith.addf %107, %109 : vector<8x128xf32>
    %111 = vector.broadcast %31 : f32 to vector<8x128xf32>
    %112 = arith.mulf %90, %111 : vector<8x128xf32>
    %113 = arith.addf %110, %112 : vector<8x128xf32>
    %114 = vector.broadcast %35 : f32 to vector<8x128xf32>
    %115 = arith.addf %113, %114 : vector<8x128xf32>
    %116 = vector.broadcast %4 : f32 to vector<8x128xf32>
    %117 = arith.mulf %69, %116 : vector<8x128xf32>
    %118 = vector.broadcast %8 : f32 to vector<8x128xf32>
    %119 = arith.mulf %72, %118 : vector<8x128xf32>
    %120 = arith.addf %117, %119 : vector<8x128xf32>
    %121 = vector.broadcast %12 : f32 to vector<8x128xf32>
    %122 = arith.mulf %75, %121 : vector<8x128xf32>
    %123 = arith.addf %120, %122 : vector<8x128xf32>
    %124 = vector.broadcast %16 : f32 to vector<8x128xf32>
    %125 = arith.mulf %78, %124 : vector<8x128xf32>
    %126 = arith.addf %123, %125 : vector<8x128xf32>
    %127 = vector.broadcast %20 : f32 to vector<8x128xf32>
    %128 = arith.mulf %81, %127 : vector<8x128xf32>
    %129 = arith.addf %126, %128 : vector<8x128xf32>
    %130 = vector.broadcast %24 : f32 to vector<8x128xf32>
    %131 = arith.mulf %84, %130 : vector<8x128xf32>
    %132 = arith.addf %129, %131 : vector<8x128xf32>
    %133 = vector.broadcast %28 : f32 to vector<8x128xf32>
    %134 = arith.mulf %87, %133 : vector<8x128xf32>
    %135 = arith.addf %132, %134 : vector<8x128xf32>
    %136 = vector.broadcast %32 : f32 to vector<8x128xf32>
    %137 = arith.mulf %90, %136 : vector<8x128xf32>
    %138 = arith.addf %135, %137 : vector<8x128xf32>
    %139 = vector.broadcast %36 : f32 to vector<8x128xf32>
    %140 = arith.addf %138, %139 : vector<8x128xf32>
    %141 = vector.broadcast %5 : f32 to vector<8x128xf32>
    %142 = arith.mulf %69, %141 : vector<8x128xf32>
    %143 = vector.broadcast %9 : f32 to vector<8x128xf32>
    %144 = arith.mulf %72, %143 : vector<8x128xf32>
    %145 = arith.addf %142, %144 : vector<8x128xf32>
    %146 = vector.broadcast %13 : f32 to vector<8x128xf32>
    %147 = arith.mulf %75, %146 : vector<8x128xf32>
    %148 = arith.addf %145, %147 : vector<8x128xf32>
    %149 = vector.broadcast %17 : f32 to vector<8x128xf32>
    %150 = arith.mulf %78, %149 : vector<8x128xf32>
    %151 = arith.addf %148, %150 : vector<8x128xf32>
    %152 = vector.broadcast %21 : f32 to vector<8x128xf32>
    %153 = arith.mulf %81, %152 : vector<8x128xf32>
    %154 = arith.addf %151, %153 : vector<8x128xf32>
    %155 = vector.broadcast %25 : f32 to vector<8x128xf32>
    %156 = arith.mulf %84, %155 : vector<8x128xf32>
    %157 = arith.addf %154, %156 : vector<8x128xf32>
    %158 = vector.broadcast %29 : f32 to vector<8x128xf32>
    %159 = arith.mulf %87, %158 : vector<8x128xf32>
    %160 = arith.addf %157, %159 : vector<8x128xf32>
    %161 = vector.broadcast %33 : f32 to vector<8x128xf32>
    %162 = arith.mulf %90, %161 : vector<8x128xf32>
    %163 = arith.addf %160, %162 : vector<8x128xf32>
    %164 = vector.broadcast %37 : f32 to vector<8x128xf32>
    %165 = arith.addf %163, %164 : vector<8x128xf32>
    %166 = vector.broadcast %6 : f32 to vector<8x128xf32>
    %167 = arith.mulf %69, %166 : vector<8x128xf32>
    %168 = vector.broadcast %10 : f32 to vector<8x128xf32>
    %169 = arith.mulf %72, %168 : vector<8x128xf32>
    %170 = arith.addf %167, %169 : vector<8x128xf32>
    %171 = vector.broadcast %14 : f32 to vector<8x128xf32>
    %172 = arith.mulf %75, %171 : vector<8x128xf32>
    %173 = arith.addf %170, %172 : vector<8x128xf32>
    %174 = vector.broadcast %18 : f32 to vector<8x128xf32>
    %175 = arith.mulf %78, %174 : vector<8x128xf32>
    %176 = arith.addf %173, %175 : vector<8x128xf32>
    %177 = vector.broadcast %22 : f32 to vector<8x128xf32>
    %178 = arith.mulf %81, %177 : vector<8x128xf32>
    %179 = arith.addf %176, %178 : vector<8x128xf32>
    %180 = vector.broadcast %26 : f32 to vector<8x128xf32>
    %181 = arith.mulf %84, %180 : vector<8x128xf32>
    %182 = arith.addf %179, %181 : vector<8x128xf32>
    %183 = vector.broadcast %30 : f32 to vector<8x128xf32>
    %184 = arith.mulf %87, %183 : vector<8x128xf32>
    %185 = arith.addf %182, %184 : vector<8x128xf32>
    %186 = vector.broadcast %34 : f32 to vector<8x128xf32>
    %187 = arith.mulf %90, %186 : vector<8x128xf32>
    %188 = arith.addf %185, %187 : vector<8x128xf32>
    %189 = vector.broadcast %38 : f32 to vector<8x128xf32>
    %190 = arith.addf %188, %189 : vector<8x128xf32>
    %191 = arith.cmpf ole, %115, %140 : vector<8x128xf32>
    %192 = arith.select %191, %115, %140 : vector<8x128xi1>, vector<8x128xf32>
    %193 = arith.select %191, %140, %115 : vector<8x128xi1>, vector<8x128xf32>
    %194 = arith.cmpf ole, %165, %190 : vector<8x128xf32>
    %195 = arith.select %194, %165, %190 : vector<8x128xi1>, vector<8x128xf32>
    %196 = arith.select %194, %190, %165 : vector<8x128xi1>, vector<8x128xf32>
    %197 = arith.cmpf ole, %192, %195 : vector<8x128xf32>
    %198 = arith.select %197, %192, %195 : vector<8x128xi1>, vector<8x128xf32>
    %199 = arith.select %197, %195, %192 : vector<8x128xi1>, vector<8x128xf32>
    %200 = arith.cmpf ole, %193, %196 : vector<8x128xf32>
    %201 = arith.select %200, %193, %196 : vector<8x128xi1>, vector<8x128xf32>
    %202 = arith.select %200, %196, %193 : vector<8x128xi1>, vector<8x128xf32>
    %203 = arith.cmpf ole, %201, %199 : vector<8x128xf32>
    %204 = arith.select %203, %201, %199 : vector<8x128xi1>, vector<8x128xf32>
    %205 = arith.select %203, %199, %201 : vector<8x128xi1>, vector<8x128xf32>
    %206 = vector.broadcast %39 : f32 to vector<8x128xf32>
    %207 = arith.mulf %198, %206 : vector<8x128xf32>
    %208 = vector.broadcast %43 : f32 to vector<8x128xf32>
    %209 = arith.mulf %204, %208 : vector<8x128xf32>
    %210 = arith.addf %207, %209 : vector<8x128xf32>
    %211 = vector.broadcast %47 : f32 to vector<8x128xf32>
    %212 = arith.mulf %205, %211 : vector<8x128xf32>
    %213 = arith.addf %210, %212 : vector<8x128xf32>
    %214 = vector.broadcast %51 : f32 to vector<8x128xf32>
    %215 = arith.mulf %202, %214 : vector<8x128xf32>
    %216 = arith.addf %213, %215 : vector<8x128xf32>
    %217 = vector.broadcast %55 : f32 to vector<8x128xf32>
    %218 = arith.addf %216, %217 : vector<8x128xf32>
    %219 = vector.broadcast %40 : f32 to vector<8x128xf32>
    %220 = arith.mulf %198, %219 : vector<8x128xf32>
    %221 = vector.broadcast %44 : f32 to vector<8x128xf32>
    %222 = arith.mulf %204, %221 : vector<8x128xf32>
    %223 = arith.addf %220, %222 : vector<8x128xf32>
    %224 = vector.broadcast %48 : f32 to vector<8x128xf32>
    %225 = arith.mulf %205, %224 : vector<8x128xf32>
    %226 = arith.addf %223, %225 : vector<8x128xf32>
    %227 = vector.broadcast %52 : f32 to vector<8x128xf32>
    %228 = arith.mulf %202, %227 : vector<8x128xf32>
    %229 = arith.addf %226, %228 : vector<8x128xf32>
    %230 = vector.broadcast %56 : f32 to vector<8x128xf32>
    %231 = arith.addf %229, %230 : vector<8x128xf32>
    %232 = vector.broadcast %41 : f32 to vector<8x128xf32>
    %233 = arith.mulf %198, %232 : vector<8x128xf32>
    %234 = vector.broadcast %45 : f32 to vector<8x128xf32>
    %235 = arith.mulf %204, %234 : vector<8x128xf32>
    %236 = arith.addf %233, %235 : vector<8x128xf32>
    %237 = vector.broadcast %49 : f32 to vector<8x128xf32>
    %238 = arith.mulf %205, %237 : vector<8x128xf32>
    %239 = arith.addf %236, %238 : vector<8x128xf32>
    %240 = vector.broadcast %53 : f32 to vector<8x128xf32>
    %241 = arith.mulf %202, %240 : vector<8x128xf32>
    %242 = arith.addf %239, %241 : vector<8x128xf32>
    %243 = vector.broadcast %57 : f32 to vector<8x128xf32>
    %244 = arith.addf %242, %243 : vector<8x128xf32>
    %245 = vector.broadcast %42 : f32 to vector<8x128xf32>
    %246 = arith.mulf %198, %245 : vector<8x128xf32>
    %247 = vector.broadcast %46 : f32 to vector<8x128xf32>
    %248 = arith.mulf %204, %247 : vector<8x128xf32>
    %249 = arith.addf %246, %248 : vector<8x128xf32>
    %250 = vector.broadcast %50 : f32 to vector<8x128xf32>
    %251 = arith.mulf %205, %250 : vector<8x128xf32>
    %252 = arith.addf %249, %251 : vector<8x128xf32>
    %253 = vector.broadcast %54 : f32 to vector<8x128xf32>
    %254 = arith.mulf %202, %253 : vector<8x128xf32>
    %255 = arith.addf %252, %254 : vector<8x128xf32>
    %256 = vector.broadcast %58 : f32 to vector<8x128xf32>
    %257 = arith.addf %255, %256 : vector<8x128xf32>
    %258 = arith.cmpf ole, %218, %231 : vector<8x128xf32>
    %259 = arith.select %258, %218, %231 : vector<8x128xi1>, vector<8x128xf32>
    %260 = arith.select %258, %231, %218 : vector<8x128xi1>, vector<8x128xf32>
    %261 = arith.cmpf ole, %244, %257 : vector<8x128xf32>
    %262 = arith.select %261, %244, %257 : vector<8x128xi1>, vector<8x128xf32>
    %263 = arith.select %261, %257, %244 : vector<8x128xi1>, vector<8x128xf32>
    %264 = arith.cmpf ole, %259, %262 : vector<8x128xf32>
    %265 = arith.select %264, %259, %262 : vector<8x128xi1>, vector<8x128xf32>
    %266 = arith.select %264, %262, %259 : vector<8x128xi1>, vector<8x128xf32>
    %267 = arith.cmpf ole, %260, %263 : vector<8x128xf32>
    %268 = arith.select %267, %260, %263 : vector<8x128xi1>, vector<8x128xf32>
    %269 = arith.select %267, %263, %260 : vector<8x128xi1>, vector<8x128xf32>
    %270 = arith.cmpf ole, %268, %266 : vector<8x128xf32>
    %271 = arith.select %270, %268, %266 : vector<8x128xi1>, vector<8x128xf32>
    %272 = arith.select %270, %266, %268 : vector<8x128xi1>, vector<8x128xf32>
    %273 = vector.broadcast %59 : f32 to vector<8x128xf32>
    %274 = arith.mulf %265, %273 : vector<8x128xf32>
    %275 = vector.broadcast %60 : f32 to vector<8x128xf32>
    %276 = arith.mulf %271, %275 : vector<8x128xf32>
    %277 = arith.addf %274, %276 : vector<8x128xf32>
    %278 = vector.broadcast %61 : f32 to vector<8x128xf32>
    %279 = arith.mulf %272, %278 : vector<8x128xf32>
    %280 = arith.addf %277, %279 : vector<8x128xf32>
    %281 = vector.broadcast %62 : f32 to vector<8x128xf32>
    %282 = arith.mulf %269, %281 : vector<8x128xf32>
    %283 = arith.addf %280, %282 : vector<8x128xf32>
    %284 = vector.broadcast %63 : f32 to vector<8x128xf32>
    %285 = arith.addf %283, %284 : vector<8x128xf32>
    %286 = vector.broadcast %60 : f32 to vector<8x128xf32>
    %287 = vector.broadcast %61 : f32 to vector<8x128xf32>
    %288 = arith.select %270, %286, %287 : vector<8x128xi1>, vector<8x128xf32>
    %289 = vector.broadcast %61 : f32 to vector<8x128xf32>
    %290 = vector.broadcast %60 : f32 to vector<8x128xf32>
    %291 = arith.select %270, %289, %290 : vector<8x128xi1>, vector<8x128xf32>
    %292 = vector.broadcast %62 : f32 to vector<8x128xf32>
    %293 = arith.select %267, %288, %292 : vector<8x128xi1>, vector<8x128xf32>
    %294 = vector.broadcast %62 : f32 to vector<8x128xf32>
    %295 = arith.select %267, %294, %288 : vector<8x128xi1>, vector<8x128xf32>
    %296 = vector.broadcast %59 : f32 to vector<8x128xf32>
    %297 = arith.select %264, %296, %291 : vector<8x128xi1>, vector<8x128xf32>
    %298 = vector.broadcast %59 : f32 to vector<8x128xf32>
    %299 = arith.select %264, %291, %298 : vector<8x128xi1>, vector<8x128xf32>
    %300 = arith.select %261, %299, %295 : vector<8x128xi1>, vector<8x128xf32>
    %301 = arith.select %261, %295, %299 : vector<8x128xi1>, vector<8x128xf32>
    %302 = arith.select %258, %297, %293 : vector<8x128xi1>, vector<8x128xf32>
    %303 = arith.select %258, %293, %297 : vector<8x128xi1>, vector<8x128xf32>
    %304 = vector.broadcast %39 : f32 to vector<8x128xf32>
    %305 = arith.mulf %302, %304 : vector<8x128xf32>
    %306 = vector.broadcast %40 : f32 to vector<8x128xf32>
    %307 = arith.mulf %303, %306 : vector<8x128xf32>
    %308 = arith.addf %305, %307 : vector<8x128xf32>
    %309 = vector.broadcast %41 : f32 to vector<8x128xf32>
    %310 = arith.mulf %300, %309 : vector<8x128xf32>
    %311 = arith.addf %308, %310 : vector<8x128xf32>
    %312 = vector.broadcast %42 : f32 to vector<8x128xf32>
    %313 = arith.mulf %301, %312 : vector<8x128xf32>
    %314 = arith.addf %311, %313 : vector<8x128xf32>
    %315 = vector.broadcast %43 : f32 to vector<8x128xf32>
    %316 = arith.mulf %302, %315 : vector<8x128xf32>
    %317 = vector.broadcast %44 : f32 to vector<8x128xf32>
    %318 = arith.mulf %303, %317 : vector<8x128xf32>
    %319 = arith.addf %316, %318 : vector<8x128xf32>
    %320 = vector.broadcast %45 : f32 to vector<8x128xf32>
    %321 = arith.mulf %300, %320 : vector<8x128xf32>
    %322 = arith.addf %319, %321 : vector<8x128xf32>
    %323 = vector.broadcast %46 : f32 to vector<8x128xf32>
    %324 = arith.mulf %301, %323 : vector<8x128xf32>
    %325 = arith.addf %322, %324 : vector<8x128xf32>
    %326 = vector.broadcast %47 : f32 to vector<8x128xf32>
    %327 = arith.mulf %302, %326 : vector<8x128xf32>
    %328 = vector.broadcast %48 : f32 to vector<8x128xf32>
    %329 = arith.mulf %303, %328 : vector<8x128xf32>
    %330 = arith.addf %327, %329 : vector<8x128xf32>
    %331 = vector.broadcast %49 : f32 to vector<8x128xf32>
    %332 = arith.mulf %300, %331 : vector<8x128xf32>
    %333 = arith.addf %330, %332 : vector<8x128xf32>
    %334 = vector.broadcast %50 : f32 to vector<8x128xf32>
    %335 = arith.mulf %301, %334 : vector<8x128xf32>
    %336 = arith.addf %333, %335 : vector<8x128xf32>
    %337 = vector.broadcast %51 : f32 to vector<8x128xf32>
    %338 = arith.mulf %302, %337 : vector<8x128xf32>
    %339 = vector.broadcast %52 : f32 to vector<8x128xf32>
    %340 = arith.mulf %303, %339 : vector<8x128xf32>
    %341 = arith.addf %338, %340 : vector<8x128xf32>
    %342 = vector.broadcast %53 : f32 to vector<8x128xf32>
    %343 = arith.mulf %300, %342 : vector<8x128xf32>
    %344 = arith.addf %341, %343 : vector<8x128xf32>
    %345 = vector.broadcast %54 : f32 to vector<8x128xf32>
    %346 = arith.mulf %301, %345 : vector<8x128xf32>
    %347 = arith.addf %344, %346 : vector<8x128xf32>
    %348 = arith.select %203, %325, %336 : vector<8x128xi1>, vector<8x128xf32>
    %349 = arith.select %203, %336, %325 : vector<8x128xi1>, vector<8x128xf32>
    %350 = arith.select %200, %348, %347 : vector<8x128xi1>, vector<8x128xf32>
    %351 = arith.select %200, %347, %348 : vector<8x128xi1>, vector<8x128xf32>
    %352 = arith.select %197, %314, %349 : vector<8x128xi1>, vector<8x128xf32>
    %353 = arith.select %197, %349, %314 : vector<8x128xi1>, vector<8x128xf32>
    %354 = arith.select %194, %353, %351 : vector<8x128xi1>, vector<8x128xf32>
    %355 = arith.select %194, %351, %353 : vector<8x128xi1>, vector<8x128xf32>
    %356 = arith.select %191, %352, %350 : vector<8x128xi1>, vector<8x128xf32>
    %357 = arith.select %191, %350, %352 : vector<8x128xi1>, vector<8x128xf32>
    %c0_18 = arith.constant 0 : index
    %358 = arith.index_cast %66 : i32 to index
    %c0_19 = arith.constant 0 : index
    %359 = vector.load %arg4[%c0_18, %358, %c0_19] : memref<3x16x128xf32, #tpu.memory_space<vmem>>, vector<1x8x128xf32>
    %360 = vector.shape_cast %359 : vector<1x8x128xf32> to vector<8x128xf32>
    %c1_20 = arith.constant 1 : index
    %361 = arith.index_cast %66 : i32 to index
    %c0_21 = arith.constant 0 : index
    %362 = vector.load %arg4[%c1_20, %361, %c0_21] : memref<3x16x128xf32, #tpu.memory_space<vmem>>, vector<1x8x128xf32>
    %363 = vector.shape_cast %362 : vector<1x8x128xf32> to vector<8x128xf32>
    %c2_22 = arith.constant 2 : index
    %364 = arith.index_cast %66 : i32 to index
    %c0_23 = arith.constant 0 : index
    %365 = vector.load %arg4[%c2_22, %364, %c0_23] : memref<3x16x128xf32, #tpu.memory_space<vmem>>, vector<1x8x128xf32>
    %366 = vector.shape_cast %365 : vector<1x8x128xf32> to vector<8x128xf32>
    %cst_24 = arith.constant 2.000000e+00 : f32
    %367 = vector.broadcast %cst_24 : f32 to vector<8x128xf32>
    %368 = arith.mulf %367, %363 : vector<8x128xf32>
    %cst_25 = arith.constant 1.000000e+00 : f32
    %369 = vector.broadcast %cst_25 : f32 to vector<8x128xf32>
    %370 = arith.subf %368, %369 : vector<8x128xf32>
    %371 = arith.subf %285, %360 : vector<8x128xf32>
    %372 = arith.mulf %371, %370 : vector<8x128xf32>
    %cst_26 = arith.constant 0.000000e+00 : f32
    %373 = vector.broadcast %cst_26 : f32 to vector<8x128xf32>
    %374 = arith.maximumf %372, %373 : vector<8x128xf32>
    %375 = vector.broadcast %3 : f32 to vector<8x128xf32>
    %376 = arith.mulf %356, %375 : vector<8x128xf32>
    %377 = vector.broadcast %4 : f32 to vector<8x128xf32>
    %378 = arith.mulf %357, %377 : vector<8x128xf32>
    %379 = arith.addf %376, %378 : vector<8x128xf32>
    %380 = vector.broadcast %5 : f32 to vector<8x128xf32>
    %381 = arith.mulf %354, %380 : vector<8x128xf32>
    %382 = arith.addf %379, %381 : vector<8x128xf32>
    %383 = vector.broadcast %6 : f32 to vector<8x128xf32>
    %384 = arith.mulf %355, %383 : vector<8x128xf32>
    %385 = arith.addf %382, %384 : vector<8x128xf32>
    %c0_27 = arith.constant 0 : index
    %386 = arith.index_cast %66 : i32 to index
    %c0_28 = arith.constant 0 : index
    %387 = vector.load %arg3[%c0_27, %386, %c0_28] : memref<8x16x128xf32, #tpu.memory_space<vmem>>, vector<1x8x128xf32>
    %388 = vector.shape_cast %387 : vector<1x8x128xf32> to vector<8x128xf32>
    %389 = arith.subf %385, %388 : vector<8x128xf32>
    %390 = arith.mulf %389, %389 : vector<8x128xf32>
    %391 = arith.mulf %385, %385 : vector<8x128xf32>
    %392 = vector.broadcast %7 : f32 to vector<8x128xf32>
    %393 = arith.mulf %356, %392 : vector<8x128xf32>
    %394 = vector.broadcast %8 : f32 to vector<8x128xf32>
    %395 = arith.mulf %357, %394 : vector<8x128xf32>
    %396 = arith.addf %393, %395 : vector<8x128xf32>
    %397 = vector.broadcast %9 : f32 to vector<8x128xf32>
    %398 = arith.mulf %354, %397 : vector<8x128xf32>
    %399 = arith.addf %396, %398 : vector<8x128xf32>
    %400 = vector.broadcast %10 : f32 to vector<8x128xf32>
    %401 = arith.mulf %355, %400 : vector<8x128xf32>
    %402 = arith.addf %399, %401 : vector<8x128xf32>
    %c1_29 = arith.constant 1 : index
    %403 = arith.index_cast %66 : i32 to index
    %c0_30 = arith.constant 0 : index
    %404 = vector.load %arg3[%c1_29, %403, %c0_30] : memref<8x16x128xf32, #tpu.memory_space<vmem>>, vector<1x8x128xf32>
    %405 = vector.shape_cast %404 : vector<1x8x128xf32> to vector<8x128xf32>
    %406 = arith.subf %402, %405 : vector<8x128xf32>
    %407 = arith.mulf %406, %406 : vector<8x128xf32>
    %408 = arith.addf %390, %407 : vector<8x128xf32>
    %409 = arith.mulf %402, %402 : vector<8x128xf32>
    %410 = arith.addf %391, %409 : vector<8x128xf32>
    %411 = vector.broadcast %11 : f32 to vector<8x128xf32>
    %412 = arith.mulf %356, %411 : vector<8x128xf32>
    %413 = vector.broadcast %12 : f32 to vector<8x128xf32>
    %414 = arith.mulf %357, %413 : vector<8x128xf32>
    %415 = arith.addf %412, %414 : vector<8x128xf32>
    %416 = vector.broadcast %13 : f32 to vector<8x128xf32>
    %417 = arith.mulf %354, %416 : vector<8x128xf32>
    %418 = arith.addf %415, %417 : vector<8x128xf32>
    %419 = vector.broadcast %14 : f32 to vector<8x128xf32>
    %420 = arith.mulf %355, %419 : vector<8x128xf32>
    %421 = arith.addf %418, %420 : vector<8x128xf32>
    %c2_31 = arith.constant 2 : index
    %422 = arith.index_cast %66 : i32 to index
    %c0_32 = arith.constant 0 : index
    %423 = vector.load %arg3[%c2_31, %422, %c0_32] : memref<8x16x128xf32, #tpu.memory_space<vmem>>, vector<1x8x128xf32>
    %424 = vector.shape_cast %423 : vector<1x8x128xf32> to vector<8x128xf32>
    %425 = arith.subf %421, %424 : vector<8x128xf32>
    %426 = arith.mulf %425, %425 : vector<8x128xf32>
    %427 = arith.addf %408, %426 : vector<8x128xf32>
    %428 = arith.mulf %421, %421 : vector<8x128xf32>
    %429 = arith.addf %410, %428 : vector<8x128xf32>
    %430 = vector.broadcast %15 : f32 to vector<8x128xf32>
    %431 = arith.mulf %356, %430 : vector<8x128xf32>
    %432 = vector.broadcast %16 : f32 to vector<8x128xf32>
    %433 = arith.mulf %357, %432 : vector<8x128xf32>
    %434 = arith.addf %431, %433 : vector<8x128xf32>
    %435 = vector.broadcast %17 : f32 to vector<8x128xf32>
    %436 = arith.mulf %354, %435 : vector<8x128xf32>
    %437 = arith.addf %434, %436 : vector<8x128xf32>
    %438 = vector.broadcast %18 : f32 to vector<8x128xf32>
    %439 = arith.mulf %355, %438 : vector<8x128xf32>
    %440 = arith.addf %437, %439 : vector<8x128xf32>
    %c3_33 = arith.constant 3 : index
    %441 = arith.index_cast %66 : i32 to index
    %c0_34 = arith.constant 0 : index
    %442 = vector.load %arg3[%c3_33, %441, %c0_34] : memref<8x16x128xf32, #tpu.memory_space<vmem>>, vector<1x8x128xf32>
    %443 = vector.shape_cast %442 : vector<1x8x128xf32> to vector<8x128xf32>
    %444 = arith.subf %440, %443 : vector<8x128xf32>
    %445 = arith.mulf %444, %444 : vector<8x128xf32>
    %446 = arith.addf %427, %445 : vector<8x128xf32>
    %447 = arith.mulf %440, %440 : vector<8x128xf32>
    %448 = arith.addf %429, %447 : vector<8x128xf32>
    %449 = vector.broadcast %19 : f32 to vector<8x128xf32>
    %450 = arith.mulf %356, %449 : vector<8x128xf32>
    %451 = vector.broadcast %20 : f32 to vector<8x128xf32>
    %452 = arith.mulf %357, %451 : vector<8x128xf32>
    %453 = arith.addf %450, %452 : vector<8x128xf32>
    %454 = vector.broadcast %21 : f32 to vector<8x128xf32>
    %455 = arith.mulf %354, %454 : vector<8x128xf32>
    %456 = arith.addf %453, %455 : vector<8x128xf32>
    %457 = vector.broadcast %22 : f32 to vector<8x128xf32>
    %458 = arith.mulf %355, %457 : vector<8x128xf32>
    %459 = arith.addf %456, %458 : vector<8x128xf32>
    %c4_35 = arith.constant 4 : index
    %460 = arith.index_cast %66 : i32 to index
    %c0_36 = arith.constant 0 : index
    %461 = vector.load %arg3[%c4_35, %460, %c0_36] : memref<8x16x128xf32, #tpu.memory_space<vmem>>, vector<1x8x128xf32>
    %462 = vector.shape_cast %461 : vector<1x8x128xf32> to vector<8x128xf32>
    %463 = arith.subf %459, %462 : vector<8x128xf32>
    %464 = arith.mulf %463, %463 : vector<8x128xf32>
    %465 = arith.addf %446, %464 : vector<8x128xf32>
    %466 = arith.mulf %459, %459 : vector<8x128xf32>
    %467 = arith.addf %448, %466 : vector<8x128xf32>
    %468 = vector.broadcast %23 : f32 to vector<8x128xf32>
    %469 = arith.mulf %356, %468 : vector<8x128xf32>
    %470 = vector.broadcast %24 : f32 to vector<8x128xf32>
    %471 = arith.mulf %357, %470 : vector<8x128xf32>
    %472 = arith.addf %469, %471 : vector<8x128xf32>
    %473 = vector.broadcast %25 : f32 to vector<8x128xf32>
    %474 = arith.mulf %354, %473 : vector<8x128xf32>
    %475 = arith.addf %472, %474 : vector<8x128xf32>
    %476 = vector.broadcast %26 : f32 to vector<8x128xf32>
    %477 = arith.mulf %355, %476 : vector<8x128xf32>
    %478 = arith.addf %475, %477 : vector<8x128xf32>
    %c5_37 = arith.constant 5 : index
    %479 = arith.index_cast %66 : i32 to index
    %c0_38 = arith.constant 0 : index
    %480 = vector.load %arg3[%c5_37, %479, %c0_38] : memref<8x16x128xf32, #tpu.memory_space<vmem>>, vector<1x8x128xf32>
    %481 = vector.shape_cast %480 : vector<1x8x128xf32> to vector<8x128xf32>
    %482 = arith.subf %478, %481 : vector<8x128xf32>
    %483 = arith.mulf %482, %482 : vector<8x128xf32>
    %484 = arith.addf %465, %483 : vector<8x128xf32>
    %485 = arith.mulf %478, %478 : vector<8x128xf32>
    %486 = arith.addf %467, %485 : vector<8x128xf32>
    %487 = vector.broadcast %27 : f32 to vector<8x128xf32>
    %488 = arith.mulf %356, %487 : vector<8x128xf32>
    %489 = vector.broadcast %28 : f32 to vector<8x128xf32>
    %490 = arith.mulf %357, %489 : vector<8x128xf32>
    %491 = arith.addf %488, %490 : vector<8x128xf32>
    %492 = vector.broadcast %29 : f32 to vector<8x128xf32>
    %493 = arith.mulf %354, %492 : vector<8x128xf32>
    %494 = arith.addf %491, %493 : vector<8x128xf32>
    %495 = vector.broadcast %30 : f32 to vector<8x128xf32>
    %496 = arith.mulf %355, %495 : vector<8x128xf32>
    %497 = arith.addf %494, %496 : vector<8x128xf32>
    %c6_39 = arith.constant 6 : index
    %498 = arith.index_cast %66 : i32 to index
    %c0_40 = arith.constant 0 : index
    %499 = vector.load %arg3[%c6_39, %498, %c0_40] : memref<8x16x128xf32, #tpu.memory_space<vmem>>, vector<1x8x128xf32>
    %500 = vector.shape_cast %499 : vector<1x8x128xf32> to vector<8x128xf32>
    %501 = arith.subf %497, %500 : vector<8x128xf32>
    %502 = arith.mulf %501, %501 : vector<8x128xf32>
    %503 = arith.addf %484, %502 : vector<8x128xf32>
    %504 = arith.mulf %497, %497 : vector<8x128xf32>
    %505 = arith.addf %486, %504 : vector<8x128xf32>
    %506 = vector.broadcast %31 : f32 to vector<8x128xf32>
    %507 = arith.mulf %356, %506 : vector<8x128xf32>
    %508 = vector.broadcast %32 : f32 to vector<8x128xf32>
    %509 = arith.mulf %357, %508 : vector<8x128xf32>
    %510 = arith.addf %507, %509 : vector<8x128xf32>
    %511 = vector.broadcast %33 : f32 to vector<8x128xf32>
    %512 = arith.mulf %354, %511 : vector<8x128xf32>
    %513 = arith.addf %510, %512 : vector<8x128xf32>
    %514 = vector.broadcast %34 : f32 to vector<8x128xf32>
    %515 = arith.mulf %355, %514 : vector<8x128xf32>
    %516 = arith.addf %513, %515 : vector<8x128xf32>
    %c7_41 = arith.constant 7 : index
    %517 = arith.index_cast %66 : i32 to index
    %c0_42 = arith.constant 0 : index
    %518 = vector.load %arg3[%c7_41, %517, %c0_42] : memref<8x16x128xf32, #tpu.memory_space<vmem>>, vector<1x8x128xf32>
    %519 = vector.shape_cast %518 : vector<1x8x128xf32> to vector<8x128xf32>
    %520 = arith.subf %516, %519 : vector<8x128xf32>
    %521 = arith.mulf %520, %520 : vector<8x128xf32>
    %522 = arith.addf %503, %521 : vector<8x128xf32>
    %523 = arith.mulf %516, %516 : vector<8x128xf32>
    %524 = arith.addf %505, %523 : vector<8x128xf32>
    %525 = arith.mulf %522, %363 : vector<8x128xf32>
    %cst_43 = arith.constant 1.000000e+00 : f32
    %526 = vector.broadcast %cst_43 : f32 to vector<8x128xf32>
    %527 = arith.subf %524, %526 : vector<8x128xf32>
    %cst_44 = arith.constant 0.000000e+00 : f32
    %528 = vector.broadcast %cst_44 : f32 to vector<8x128xf32>
    %529 = arith.maximumf %527, %528 : vector<8x128xf32>
    %530 = arith.addf %374, %525 : vector<8x128xf32>
    %531 = arith.addf %530, %529 : vector<8x128xf32>
    %532 = arith.mulf %531, %366 : vector<8x128xf32>
    %533 = arith.addf %64, %532 : vector<8x128xf32>
    %c1_i32 = arith.constant 1 : i32
    %c8_i32_45 = arith.constant 8 : i32
    %534 = arith.muli %c1_i32, %c8_i32_45 : i32
    %535 = tpu.assume_multiple %534, 8 : i32
    %c0_46 = arith.constant 0 : index
    %536 = arith.index_cast %535 : i32 to index
    %c0_47 = arith.constant 0 : index
    %537 = vector.load %arg2[%c0_46, %536, %c0_47] : memref<8x16x128xf32, #tpu.memory_space<vmem>>, vector<1x8x128xf32>
    %538 = vector.shape_cast %537 : vector<1x8x128xf32> to vector<8x128xf32>
    %c1_48 = arith.constant 1 : index
    %539 = arith.index_cast %535 : i32 to index
    %c0_49 = arith.constant 0 : index
    %540 = vector.load %arg2[%c1_48, %539, %c0_49] : memref<8x16x128xf32, #tpu.memory_space<vmem>>, vector<1x8x128xf32>
    %541 = vector.shape_cast %540 : vector<1x8x128xf32> to vector<8x128xf32>
    %c2_50 = arith.constant 2 : index
    %542 = arith.index_cast %535 : i32 to index
    %c0_51 = arith.constant 0 : index
    %543 = vector.load %arg2[%c2_50, %542, %c0_51] : memref<8x16x128xf32, #tpu.memory_space<vmem>>, vector<1x8x128xf32>
    %544 = vector.shape_cast %543 : vector<1x8x128xf32> to vector<8x128xf32>
    %c3_52 = arith.constant 3 : index
    %545 = arith.index_cast %535 : i32 to index
    %c0_53 = arith.constant 0 : index
    %546 = vector.load %arg2[%c3_52, %545, %c0_53] : memref<8x16x128xf32, #tpu.memory_space<vmem>>, vector<1x8x128xf32>
    %547 = vector.shape_cast %546 : vector<1x8x128xf32> to vector<8x128xf32>
    %c4_54 = arith.constant 4 : index
    %548 = arith.index_cast %535 : i32 to index
    %c0_55 = arith.constant 0 : index
    %549 = vector.load %arg2[%c4_54, %548, %c0_55] : memref<8x16x128xf32, #tpu.memory_space<vmem>>, vector<1x8x128xf32>
    %550 = vector.shape_cast %549 : vector<1x8x128xf32> to vector<8x128xf32>
    %c5_56 = arith.constant 5 : index
    %551 = arith.index_cast %535 : i32 to index
    %c0_57 = arith.constant 0 : index
    %552 = vector.load %arg2[%c5_56, %551, %c0_57] : memref<8x16x128xf32, #tpu.memory_space<vmem>>, vector<1x8x128xf32>
    %553 = vector.shape_cast %552 : vector<1x8x128xf32> to vector<8x128xf32>
    %c6_58 = arith.constant 6 : index
    %554 = arith.index_cast %535 : i32 to index
    %c0_59 = arith.constant 0 : index
    %555 = vector.load %arg2[%c6_58, %554, %c0_59] : memref<8x16x128xf32, #tpu.memory_space<vmem>>, vector<1x8x128xf32>
    %556 = vector.shape_cast %555 : vector<1x8x128xf32> to vector<8x128xf32>
    %c7_60 = arith.constant 7 : index
    %557 = arith.index_cast %535 : i32 to index
    %c0_61 = arith.constant 0 : index
    %558 = vector.load %arg2[%c7_60, %557, %c0_61] : memref<8x16x128xf32, #tpu.memory_space<vmem>>, vector<1x8x128xf32>
    %559 = vector.shape_cast %558 : vector<1x8x128xf32> to vector<8x128xf32>
    %560 = vector.broadcast %3 : f32 to vector<8x128xf32>
    %561 = arith.mulf %538, %560 : vector<8x128xf32>
    %562 = vector.broadcast %7 : f32 to vector<8x128xf32>
    %563 = arith.mulf %541, %562 : vector<8x128xf32>
    %564 = arith.addf %561, %563 : vector<8x128xf32>
    %565 = vector.broadcast %11 : f32 to vector<8x128xf32>
    %566 = arith.mulf %544, %565 : vector<8x128xf32>
    %567 = arith.addf %564, %566 : vector<8x128xf32>
    %568 = vector.broadcast %15 : f32 to vector<8x128xf32>
    %569 = arith.mulf %547, %568 : vector<8x128xf32>
    %570 = arith.addf %567, %569 : vector<8x128xf32>
    %571 = vector.broadcast %19 : f32 to vector<8x128xf32>
    %572 = arith.mulf %550, %571 : vector<8x128xf32>
    %573 = arith.addf %570, %572 : vector<8x128xf32>
    %574 = vector.broadcast %23 : f32 to vector<8x128xf32>
    %575 = arith.mulf %553, %574 : vector<8x128xf32>
    %576 = arith.addf %573, %575 : vector<8x128xf32>
    %577 = vector.broadcast %27 : f32 to vector<8x128xf32>
    %578 = arith.mulf %556, %577 : vector<8x128xf32>
    %579 = arith.addf %576, %578 : vector<8x128xf32>
    %580 = vector.broadcast %31 : f32 to vector<8x128xf32>
    %581 = arith.mulf %559, %580 : vector<8x128xf32>
    %582 = arith.addf %579, %581 : vector<8x128xf32>
    %583 = vector.broadcast %35 : f32 to vector<8x128xf32>
    %584 = arith.addf %582, %583 : vector<8x128xf32>
    %585 = vector.broadcast %4 : f32 to vector<8x128xf32>
    %586 = arith.mulf %538, %585 : vector<8x128xf32>
    %587 = vector.broadcast %8 : f32 to vector<8x128xf32>
    %588 = arith.mulf %541, %587 : vector<8x128xf32>
    %589 = arith.addf %586, %588 : vector<8x128xf32>
    %590 = vector.broadcast %12 : f32 to vector<8x128xf32>
    %591 = arith.mulf %544, %590 : vector<8x128xf32>
    %592 = arith.addf %589, %591 : vector<8x128xf32>
    %593 = vector.broadcast %16 : f32 to vector<8x128xf32>
    %594 = arith.mulf %547, %593 : vector<8x128xf32>
    %595 = arith.addf %592, %594 : vector<8x128xf32>
    %596 = vector.broadcast %20 : f32 to vector<8x128xf32>
    %597 = arith.mulf %550, %596 : vector<8x128xf32>
    %598 = arith.addf %595, %597 : vector<8x128xf32>
    %599 = vector.broadcast %24 : f32 to vector<8x128xf32>
    %600 = arith.mulf %553, %599 : vector<8x128xf32>
    %601 = arith.addf %598, %600 : vector<8x128xf32>
    %602 = vector.broadcast %28 : f32 to vector<8x128xf32>
    %603 = arith.mulf %556, %602 : vector<8x128xf32>
    %604 = arith.addf %601, %603 : vector<8x128xf32>
    %605 = vector.broadcast %32 : f32 to vector<8x128xf32>
    %606 = arith.mulf %559, %605 : vector<8x128xf32>
    %607 = arith.addf %604, %606 : vector<8x128xf32>
    %608 = vector.broadcast %36 : f32 to vector<8x128xf32>
    %609 = arith.addf %607, %608 : vector<8x128xf32>
    %610 = vector.broadcast %5 : f32 to vector<8x128xf32>
    %611 = arith.mulf %538, %610 : vector<8x128xf32>
    %612 = vector.broadcast %9 : f32 to vector<8x128xf32>
    %613 = arith.mulf %541, %612 : vector<8x128xf32>
    %614 = arith.addf %611, %613 : vector<8x128xf32>
    %615 = vector.broadcast %13 : f32 to vector<8x128xf32>
    %616 = arith.mulf %544, %615 : vector<8x128xf32>
    %617 = arith.addf %614, %616 : vector<8x128xf32>
    %618 = vector.broadcast %17 : f32 to vector<8x128xf32>
    %619 = arith.mulf %547, %618 : vector<8x128xf32>
    %620 = arith.addf %617, %619 : vector<8x128xf32>
    %621 = vector.broadcast %21 : f32 to vector<8x128xf32>
    %622 = arith.mulf %550, %621 : vector<8x128xf32>
    %623 = arith.addf %620, %622 : vector<8x128xf32>
    %624 = vector.broadcast %25 : f32 to vector<8x128xf32>
    %625 = arith.mulf %553, %624 : vector<8x128xf32>
    %626 = arith.addf %623, %625 : vector<8x128xf32>
    %627 = vector.broadcast %29 : f32 to vector<8x128xf32>
    %628 = arith.mulf %556, %627 : vector<8x128xf32>
    %629 = arith.addf %626, %628 : vector<8x128xf32>
    %630 = vector.broadcast %33 : f32 to vector<8x128xf32>
    %631 = arith.mulf %559, %630 : vector<8x128xf32>
    %632 = arith.addf %629, %631 : vector<8x128xf32>
    %633 = vector.broadcast %37 : f32 to vector<8x128xf32>
    %634 = arith.addf %632, %633 : vector<8x128xf32>
    %635 = vector.broadcast %6 : f32 to vector<8x128xf32>
    %636 = arith.mulf %538, %635 : vector<8x128xf32>
    %637 = vector.broadcast %10 : f32 to vector<8x128xf32>
    %638 = arith.mulf %541, %637 : vector<8x128xf32>
    %639 = arith.addf %636, %638 : vector<8x128xf32>
    %640 = vector.broadcast %14 : f32 to vector<8x128xf32>
    %641 = arith.mulf %544, %640 : vector<8x128xf32>
    %642 = arith.addf %639, %641 : vector<8x128xf32>
    %643 = vector.broadcast %18 : f32 to vector<8x128xf32>
    %644 = arith.mulf %547, %643 : vector<8x128xf32>
    %645 = arith.addf %642, %644 : vector<8x128xf32>
    %646 = vector.broadcast %22 : f32 to vector<8x128xf32>
    %647 = arith.mulf %550, %646 : vector<8x128xf32>
    %648 = arith.addf %645, %647 : vector<8x128xf32>
    %649 = vector.broadcast %26 : f32 to vector<8x128xf32>
    %650 = arith.mulf %553, %649 : vector<8x128xf32>
    %651 = arith.addf %648, %650 : vector<8x128xf32>
    %652 = vector.broadcast %30 : f32 to vector<8x128xf32>
    %653 = arith.mulf %556, %652 : vector<8x128xf32>
    %654 = arith.addf %651, %653 : vector<8x128xf32>
    %655 = vector.broadcast %34 : f32 to vector<8x128xf32>
    %656 = arith.mulf %559, %655 : vector<8x128xf32>
    %657 = arith.addf %654, %656 : vector<8x128xf32>
    %658 = vector.broadcast %38 : f32 to vector<8x128xf32>
    %659 = arith.addf %657, %658 : vector<8x128xf32>
    %660 = arith.cmpf ole, %584, %609 : vector<8x128xf32>
    %661 = arith.select %660, %584, %609 : vector<8x128xi1>, vector<8x128xf32>
    %662 = arith.select %660, %609, %584 : vector<8x128xi1>, vector<8x128xf32>
    %663 = arith.cmpf ole, %634, %659 : vector<8x128xf32>
    %664 = arith.select %663, %634, %659 : vector<8x128xi1>, vector<8x128xf32>
    %665 = arith.select %663, %659, %634 : vector<8x128xi1>, vector<8x128xf32>
    %666 = arith.cmpf ole, %661, %664 : vector<8x128xf32>
    %667 = arith.select %666, %661, %664 : vector<8x128xi1>, vector<8x128xf32>
    %668 = arith.select %666, %664, %661 : vector<8x128xi1>, vector<8x128xf32>
    %669 = arith.cmpf ole, %662, %665 : vector<8x128xf32>
    %670 = arith.select %669, %662, %665 : vector<8x128xi1>, vector<8x128xf32>
    %671 = arith.select %669, %665, %662 : vector<8x128xi1>, vector<8x128xf32>
    %672 = arith.cmpf ole, %670, %668 : vector<8x128xf32>
    %673 = arith.select %672, %670, %668 : vector<8x128xi1>, vector<8x128xf32>
    %674 = arith.select %672, %668, %670 : vector<8x128xi1>, vector<8x128xf32>
    %675 = vector.broadcast %39 : f32 to vector<8x128xf32>
    %676 = arith.mulf %667, %675 : vector<8x128xf32>
    %677 = vector.broadcast %43 : f32 to vector<8x128xf32>
    %678 = arith.mulf %673, %677 : vector<8x128xf32>
    %679 = arith.addf %676, %678 : vector<8x128xf32>
    %680 = vector.broadcast %47 : f32 to vector<8x128xf32>
    %681 = arith.mulf %674, %680 : vector<8x128xf32>
    %682 = arith.addf %679, %681 : vector<8x128xf32>
    %683 = vector.broadcast %51 : f32 to vector<8x128xf32>
    %684 = arith.mulf %671, %683 : vector<8x128xf32>
    %685 = arith.addf %682, %684 : vector<8x128xf32>
    %686 = vector.broadcast %55 : f32 to vector<8x128xf32>
    %687 = arith.addf %685, %686 : vector<8x128xf32>
    %688 = vector.broadcast %40 : f32 to vector<8x128xf32>
    %689 = arith.mulf %667, %688 : vector<8x128xf32>
    %690 = vector.broadcast %44 : f32 to vector<8x128xf32>
    %691 = arith.mulf %673, %690 : vector<8x128xf32>
    %692 = arith.addf %689, %691 : vector<8x128xf32>
    %693 = vector.broadcast %48 : f32 to vector<8x128xf32>
    %694 = arith.mulf %674, %693 : vector<8x128xf32>
    %695 = arith.addf %692, %694 : vector<8x128xf32>
    %696 = vector.broadcast %52 : f32 to vector<8x128xf32>
    %697 = arith.mulf %671, %696 : vector<8x128xf32>
    %698 = arith.addf %695, %697 : vector<8x128xf32>
    %699 = vector.broadcast %56 : f32 to vector<8x128xf32>
    %700 = arith.addf %698, %699 : vector<8x128xf32>
    %701 = vector.broadcast %41 : f32 to vector<8x128xf32>
    %702 = arith.mulf %667, %701 : vector<8x128xf32>
    %703 = vector.broadcast %45 : f32 to vector<8x128xf32>
    %704 = arith.mulf %673, %703 : vector<8x128xf32>
    %705 = arith.addf %702, %704 : vector<8x128xf32>
    %706 = vector.broadcast %49 : f32 to vector<8x128xf32>
    %707 = arith.mulf %674, %706 : vector<8x128xf32>
    %708 = arith.addf %705, %707 : vector<8x128xf32>
    %709 = vector.broadcast %53 : f32 to vector<8x128xf32>
    %710 = arith.mulf %671, %709 : vector<8x128xf32>
    %711 = arith.addf %708, %710 : vector<8x128xf32>
    %712 = vector.broadcast %57 : f32 to vector<8x128xf32>
    %713 = arith.addf %711, %712 : vector<8x128xf32>
    %714 = vector.broadcast %42 : f32 to vector<8x128xf32>
    %715 = arith.mulf %667, %714 : vector<8x128xf32>
    %716 = vector.broadcast %46 : f32 to vector<8x128xf32>
    %717 = arith.mulf %673, %716 : vector<8x128xf32>
    %718 = arith.addf %715, %717 : vector<8x128xf32>
    %719 = vector.broadcast %50 : f32 to vector<8x128xf32>
    %720 = arith.mulf %674, %719 : vector<8x128xf32>
    %721 = arith.addf %718, %720 : vector<8x128xf32>
    %722 = vector.broadcast %54 : f32 to vector<8x128xf32>
    %723 = arith.mulf %671, %722 : vector<8x128xf32>
    %724 = arith.addf %721, %723 : vector<8x128xf32>
    %725 = vector.broadcast %58 : f32 to vector<8x128xf32>
    %726 = arith.addf %724, %725 : vector<8x128xf32>
    %727 = arith.cmpf ole, %687, %700 : vector<8x128xf32>
    %728 = arith.select %727, %687, %700 : vector<8x128xi1>, vector<8x128xf32>
    %729 = arith.select %727, %700, %687 : vector<8x128xi1>, vector<8x128xf32>
    %730 = arith.cmpf ole, %713, %726 : vector<8x128xf32>
    %731 = arith.select %730, %713, %726 : vector<8x128xi1>, vector<8x128xf32>
    %732 = arith.select %730, %726, %713 : vector<8x128xi1>, vector<8x128xf32>
    %733 = arith.cmpf ole, %728, %731 : vector<8x128xf32>
    %734 = arith.select %733, %728, %731 : vector<8x128xi1>, vector<8x128xf32>
    %735 = arith.select %733, %731, %728 : vector<8x128xi1>, vector<8x128xf32>
    %736 = arith.cmpf ole, %729, %732 : vector<8x128xf32>
    %737 = arith.select %736, %729, %732 : vector<8x128xi1>, vector<8x128xf32>
    %738 = arith.select %736, %732, %729 : vector<8x128xi1>, vector<8x128xf32>
    %739 = arith.cmpf ole, %737, %735 : vector<8x128xf32>
    %740 = arith.select %739, %737, %735 : vector<8x128xi1>, vector<8x128xf32>
    %741 = arith.select %739, %735, %737 : vector<8x128xi1>, vector<8x128xf32>
    %742 = vector.broadcast %59 : f32 to vector<8x128xf32>
    %743 = arith.mulf %734, %742 : vector<8x128xf32>
    %744 = vector.broadcast %60 : f32 to vector<8x128xf32>
    %745 = arith.mulf %740, %744 : vector<8x128xf32>
    %746 = arith.addf %743, %745 : vector<8x128xf32>
    %747 = vector.broadcast %61 : f32 to vector<8x128xf32>
    %748 = arith.mulf %741, %747 : vector<8x128xf32>
    %749 = arith.addf %746, %748 : vector<8x128xf32>
    %750 = vector.broadcast %62 : f32 to vector<8x128xf32>
    %751 = arith.mulf %738, %750 : vector<8x128xf32>
    %752 = arith.addf %749, %751 : vector<8x128xf32>
    %753 = vector.broadcast %63 : f32 to vector<8x128xf32>
    %754 = arith.addf %752, %753 : vector<8x128xf32>
    %755 = vector.broadcast %60 : f32 to vector<8x128xf32>
    %756 = vector.broadcast %61 : f32 to vector<8x128xf32>
    %757 = arith.select %739, %755, %756 : vector<8x128xi1>, vector<8x128xf32>
    %758 = vector.broadcast %61 : f32 to vector<8x128xf32>
    %759 = vector.broadcast %60 : f32 to vector<8x128xf32>
    %760 = arith.select %739, %758, %759 : vector<8x128xi1>, vector<8x128xf32>
    %761 = vector.broadcast %62 : f32 to vector<8x128xf32>
    %762 = arith.select %736, %757, %761 : vector<8x128xi1>, vector<8x128xf32>
    %763 = vector.broadcast %62 : f32 to vector<8x128xf32>
    %764 = arith.select %736, %763, %757 : vector<8x128xi1>, vector<8x128xf32>
    %765 = vector.broadcast %59 : f32 to vector<8x128xf32>
    %766 = arith.select %733, %765, %760 : vector<8x128xi1>, vector<8x128xf32>
    %767 = vector.broadcast %59 : f32 to vector<8x128xf32>
    %768 = arith.select %733, %760, %767 : vector<8x128xi1>, vector<8x128xf32>
    %769 = arith.select %730, %768, %764 : vector<8x128xi1>, vector<8x128xf32>
    %770 = arith.select %730, %764, %768 : vector<8x128xi1>, vector<8x128xf32>
    %771 = arith.select %727, %766, %762 : vector<8x128xi1>, vector<8x128xf32>
    %772 = arith.select %727, %762, %766 : vector<8x128xi1>, vector<8x128xf32>
    %773 = vector.broadcast %39 : f32 to vector<8x128xf32>
    %774 = arith.mulf %771, %773 : vector<8x128xf32>
    %775 = vector.broadcast %40 : f32 to vector<8x128xf32>
    %776 = arith.mulf %772, %775 : vector<8x128xf32>
    %777 = arith.addf %774, %776 : vector<8x128xf32>
    %778 = vector.broadcast %41 : f32 to vector<8x128xf32>
    %779 = arith.mulf %769, %778 : vector<8x128xf32>
    %780 = arith.addf %777, %779 : vector<8x128xf32>
    %781 = vector.broadcast %42 : f32 to vector<8x128xf32>
    %782 = arith.mulf %770, %781 : vector<8x128xf32>
    %783 = arith.addf %780, %782 : vector<8x128xf32>
    %784 = vector.broadcast %43 : f32 to vector<8x128xf32>
    %785 = arith.mulf %771, %784 : vector<8x128xf32>
    %786 = vector.broadcast %44 : f32 to vector<8x128xf32>
    %787 = arith.mulf %772, %786 : vector<8x128xf32>
    %788 = arith.addf %785, %787 : vector<8x128xf32>
    %789 = vector.broadcast %45 : f32 to vector<8x128xf32>
    %790 = arith.mulf %769, %789 : vector<8x128xf32>
    %791 = arith.addf %788, %790 : vector<8x128xf32>
    %792 = vector.broadcast %46 : f32 to vector<8x128xf32>
    %793 = arith.mulf %770, %792 : vector<8x128xf32>
    %794 = arith.addf %791, %793 : vector<8x128xf32>
    %795 = vector.broadcast %47 : f32 to vector<8x128xf32>
    %796 = arith.mulf %771, %795 : vector<8x128xf32>
    %797 = vector.broadcast %48 : f32 to vector<8x128xf32>
    %798 = arith.mulf %772, %797 : vector<8x128xf32>
    %799 = arith.addf %796, %798 : vector<8x128xf32>
    %800 = vector.broadcast %49 : f32 to vector<8x128xf32>
    %801 = arith.mulf %769, %800 : vector<8x128xf32>
    %802 = arith.addf %799, %801 : vector<8x128xf32>
    %803 = vector.broadcast %50 : f32 to vector<8x128xf32>
    %804 = arith.mulf %770, %803 : vector<8x128xf32>
    %805 = arith.addf %802, %804 : vector<8x128xf32>
    %806 = vector.broadcast %51 : f32 to vector<8x128xf32>
    %807 = arith.mulf %771, %806 : vector<8x128xf32>
    %808 = vector.broadcast %52 : f32 to vector<8x128xf32>
    %809 = arith.mulf %772, %808 : vector<8x128xf32>
    %810 = arith.addf %807, %809 : vector<8x128xf32>
    %811 = vector.broadcast %53 : f32 to vector<8x128xf32>
    %812 = arith.mulf %769, %811 : vector<8x128xf32>
    %813 = arith.addf %810, %812 : vector<8x128xf32>
    %814 = vector.broadcast %54 : f32 to vector<8x128xf32>
    %815 = arith.mulf %770, %814 : vector<8x128xf32>
    %816 = arith.addf %813, %815 : vector<8x128xf32>
    %817 = arith.select %672, %794, %805 : vector<8x128xi1>, vector<8x128xf32>
    %818 = arith.select %672, %805, %794 : vector<8x128xi1>, vector<8x128xf32>
    %819 = arith.select %669, %817, %816 : vector<8x128xi1>, vector<8x128xf32>
    %820 = arith.select %669, %816, %817 : vector<8x128xi1>, vector<8x128xf32>
    %821 = arith.select %666, %783, %818 : vector<8x128xi1>, vector<8x128xf32>
    %822 = arith.select %666, %818, %783 : vector<8x128xi1>, vector<8x128xf32>
    %823 = arith.select %663, %822, %820 : vector<8x128xi1>, vector<8x128xf32>
    %824 = arith.select %663, %820, %822 : vector<8x128xi1>, vector<8x128xf32>
    %825 = arith.select %660, %821, %819 : vector<8x128xi1>, vector<8x128xf32>
    %826 = arith.select %660, %819, %821 : vector<8x128xi1>, vector<8x128xf32>
    %c0_62 = arith.constant 0 : index
    %827 = arith.index_cast %535 : i32 to index
    %c0_63 = arith.constant 0 : index
    %828 = vector.load %arg4[%c0_62, %827, %c0_63] : memref<3x16x128xf32, #tpu.memory_space<vmem>>, vector<1x8x128xf32>
    %829 = vector.shape_cast %828 : vector<1x8x128xf32> to vector<8x128xf32>
    %c1_64 = arith.constant 1 : index
    %830 = arith.index_cast %535 : i32 to index
    %c0_65 = arith.constant 0 : index
    %831 = vector.load %arg4[%c1_64, %830, %c0_65] : memref<3x16x128xf32, #tpu.memory_space<vmem>>, vector<1x8x128xf32>
    %832 = vector.shape_cast %831 : vector<1x8x128xf32> to vector<8x128xf32>
    %c2_66 = arith.constant 2 : index
    %833 = arith.index_cast %535 : i32 to index
    %c0_67 = arith.constant 0 : index
    %834 = vector.load %arg4[%c2_66, %833, %c0_67] : memref<3x16x128xf32, #tpu.memory_space<vmem>>, vector<1x8x128xf32>
    %835 = vector.shape_cast %834 : vector<1x8x128xf32> to vector<8x128xf32>
    %cst_68 = arith.constant 2.000000e+00 : f32
    %836 = vector.broadcast %cst_68 : f32 to vector<8x128xf32>
    %837 = arith.mulf %836, %832 : vector<8x128xf32>
    %cst_69 = arith.constant 1.000000e+00 : f32
    %838 = vector.broadcast %cst_69 : f32 to vector<8x128xf32>
    %839 = arith.subf %837, %838 : vector<8x128xf32>
    %840 = arith.subf %754, %829 : vector<8x128xf32>
    %841 = arith.mulf %840, %839 : vector<8x128xf32>
    %cst_70 = arith.constant 0.000000e+00 : f32
    %842 = vector.broadcast %cst_70 : f32 to vector<8x128xf32>
    %843 = arith.maximumf %841, %842 : vector<8x128xf32>
    %844 = vector.broadcast %3 : f32 to vector<8x128xf32>
    %845 = arith.mulf %825, %844 : vector<8x128xf32>
    %846 = vector.broadcast %4 : f32 to vector<8x128xf32>
    %847 = arith.mulf %826, %846 : vector<8x128xf32>
    %848 = arith.addf %845, %847 : vector<8x128xf32>
    %849 = vector.broadcast %5 : f32 to vector<8x128xf32>
    %850 = arith.mulf %823, %849 : vector<8x128xf32>
    %851 = arith.addf %848, %850 : vector<8x128xf32>
    %852 = vector.broadcast %6 : f32 to vector<8x128xf32>
    %853 = arith.mulf %824, %852 : vector<8x128xf32>
    %854 = arith.addf %851, %853 : vector<8x128xf32>
    %c0_71 = arith.constant 0 : index
    %855 = arith.index_cast %535 : i32 to index
    %c0_72 = arith.constant 0 : index
    %856 = vector.load %arg3[%c0_71, %855, %c0_72] : memref<8x16x128xf32, #tpu.memory_space<vmem>>, vector<1x8x128xf32>
    %857 = vector.shape_cast %856 : vector<1x8x128xf32> to vector<8x128xf32>
    %858 = arith.subf %854, %857 : vector<8x128xf32>
    %859 = arith.mulf %858, %858 : vector<8x128xf32>
    %860 = arith.mulf %854, %854 : vector<8x128xf32>
    %861 = vector.broadcast %7 : f32 to vector<8x128xf32>
    %862 = arith.mulf %825, %861 : vector<8x128xf32>
    %863 = vector.broadcast %8 : f32 to vector<8x128xf32>
    %864 = arith.mulf %826, %863 : vector<8x128xf32>
    %865 = arith.addf %862, %864 : vector<8x128xf32>
    %866 = vector.broadcast %9 : f32 to vector<8x128xf32>
    %867 = arith.mulf %823, %866 : vector<8x128xf32>
    %868 = arith.addf %865, %867 : vector<8x128xf32>
    %869 = vector.broadcast %10 : f32 to vector<8x128xf32>
    %870 = arith.mulf %824, %869 : vector<8x128xf32>
    %871 = arith.addf %868, %870 : vector<8x128xf32>
    %c1_73 = arith.constant 1 : index
    %872 = arith.index_cast %535 : i32 to index
    %c0_74 = arith.constant 0 : index
    %873 = vector.load %arg3[%c1_73, %872, %c0_74] : memref<8x16x128xf32, #tpu.memory_space<vmem>>, vector<1x8x128xf32>
    %874 = vector.shape_cast %873 : vector<1x8x128xf32> to vector<8x128xf32>
    %875 = arith.subf %871, %874 : vector<8x128xf32>
    %876 = arith.mulf %875, %875 : vector<8x128xf32>
    %877 = arith.addf %859, %876 : vector<8x128xf32>
    %878 = arith.mulf %871, %871 : vector<8x128xf32>
    %879 = arith.addf %860, %878 : vector<8x128xf32>
    %880 = vector.broadcast %11 : f32 to vector<8x128xf32>
    %881 = arith.mulf %825, %880 : vector<8x128xf32>
    %882 = vector.broadcast %12 : f32 to vector<8x128xf32>
    %883 = arith.mulf %826, %882 : vector<8x128xf32>
    %884 = arith.addf %881, %883 : vector<8x128xf32>
    %885 = vector.broadcast %13 : f32 to vector<8x128xf32>
    %886 = arith.mulf %823, %885 : vector<8x128xf32>
    %887 = arith.addf %884, %886 : vector<8x128xf32>
    %888 = vector.broadcast %14 : f32 to vector<8x128xf32>
    %889 = arith.mulf %824, %888 : vector<8x128xf32>
    %890 = arith.addf %887, %889 : vector<8x128xf32>
    %c2_75 = arith.constant 2 : index
    %891 = arith.index_cast %535 : i32 to index
    %c0_76 = arith.constant 0 : index
    %892 = vector.load %arg3[%c2_75, %891, %c0_76] : memref<8x16x128xf32, #tpu.memory_space<vmem>>, vector<1x8x128xf32>
    %893 = vector.shape_cast %892 : vector<1x8x128xf32> to vector<8x128xf32>
    %894 = arith.subf %890, %893 : vector<8x128xf32>
    %895 = arith.mulf %894, %894 : vector<8x128xf32>
    %896 = arith.addf %877, %895 : vector<8x128xf32>
    %897 = arith.mulf %890, %890 : vector<8x128xf32>
    %898 = arith.addf %879, %897 : vector<8x128xf32>
    %899 = vector.broadcast %15 : f32 to vector<8x128xf32>
    %900 = arith.mulf %825, %899 : vector<8x128xf32>
    %901 = vector.broadcast %16 : f32 to vector<8x128xf32>
    %902 = arith.mulf %826, %901 : vector<8x128xf32>
    %903 = arith.addf %900, %902 : vector<8x128xf32>
    %904 = vector.broadcast %17 : f32 to vector<8x128xf32>
    %905 = arith.mulf %823, %904 : vector<8x128xf32>
    %906 = arith.addf %903, %905 : vector<8x128xf32>
    %907 = vector.broadcast %18 : f32 to vector<8x128xf32>
    %908 = arith.mulf %824, %907 : vector<8x128xf32>
    %909 = arith.addf %906, %908 : vector<8x128xf32>
    %c3_77 = arith.constant 3 : index
    %910 = arith.index_cast %535 : i32 to index
    %c0_78 = arith.constant 0 : index
    %911 = vector.load %arg3[%c3_77, %910, %c0_78] : memref<8x16x128xf32, #tpu.memory_space<vmem>>, vector<1x8x128xf32>
    %912 = vector.shape_cast %911 : vector<1x8x128xf32> to vector<8x128xf32>
    %913 = arith.subf %909, %912 : vector<8x128xf32>
    %914 = arith.mulf %913, %913 : vector<8x128xf32>
    %915 = arith.addf %896, %914 : vector<8x128xf32>
    %916 = arith.mulf %909, %909 : vector<8x128xf32>
    %917 = arith.addf %898, %916 : vector<8x128xf32>
    %918 = vector.broadcast %19 : f32 to vector<8x128xf32>
    %919 = arith.mulf %825, %918 : vector<8x128xf32>
    %920 = vector.broadcast %20 : f32 to vector<8x128xf32>
    %921 = arith.mulf %826, %920 : vector<8x128xf32>
    %922 = arith.addf %919, %921 : vector<8x128xf32>
    %923 = vector.broadcast %21 : f32 to vector<8x128xf32>
    %924 = arith.mulf %823, %923 : vector<8x128xf32>
    %925 = arith.addf %922, %924 : vector<8x128xf32>
    %926 = vector.broadcast %22 : f32 to vector<8x128xf32>
    %927 = arith.mulf %824, %926 : vector<8x128xf32>
    %928 = arith.addf %925, %927 : vector<8x128xf32>
    %c4_79 = arith.constant 4 : index
    %929 = arith.index_cast %535 : i32 to index
    %c0_80 = arith.constant 0 : index
    %930 = vector.load %arg3[%c4_79, %929, %c0_80] : memref<8x16x128xf32, #tpu.memory_space<vmem>>, vector<1x8x128xf32>
    %931 = vector.shape_cast %930 : vector<1x8x128xf32> to vector<8x128xf32>
    %932 = arith.subf %928, %931 : vector<8x128xf32>
    %933 = arith.mulf %932, %932 : vector<8x128xf32>
    %934 = arith.addf %915, %933 : vector<8x128xf32>
    %935 = arith.mulf %928, %928 : vector<8x128xf32>
    %936 = arith.addf %917, %935 : vector<8x128xf32>
    %937 = vector.broadcast %23 : f32 to vector<8x128xf32>
    %938 = arith.mulf %825, %937 : vector<8x128xf32>
    %939 = vector.broadcast %24 : f32 to vector<8x128xf32>
    %940 = arith.mulf %826, %939 : vector<8x128xf32>
    %941 = arith.addf %938, %940 : vector<8x128xf32>
    %942 = vector.broadcast %25 : f32 to vector<8x128xf32>
    %943 = arith.mulf %823, %942 : vector<8x128xf32>
    %944 = arith.addf %941, %943 : vector<8x128xf32>
    %945 = vector.broadcast %26 : f32 to vector<8x128xf32>
    %946 = arith.mulf %824, %945 : vector<8x128xf32>
    %947 = arith.addf %944, %946 : vector<8x128xf32>
    %c5_81 = arith.constant 5 : index
    %948 = arith.index_cast %535 : i32 to index
    %c0_82 = arith.constant 0 : index
    %949 = vector.load %arg3[%c5_81, %948, %c0_82] : memref<8x16x128xf32, #tpu.memory_space<vmem>>, vector<1x8x128xf32>
    %950 = vector.shape_cast %949 : vector<1x8x128xf32> to vector<8x128xf32>
    %951 = arith.subf %947, %950 : vector<8x128xf32>
    %952 = arith.mulf %951, %951 : vector<8x128xf32>
    %953 = arith.addf %934, %952 : vector<8x128xf32>
    %954 = arith.mulf %947, %947 : vector<8x128xf32>
    %955 = arith.addf %936, %954 : vector<8x128xf32>
    %956 = vector.broadcast %27 : f32 to vector<8x128xf32>
    %957 = arith.mulf %825, %956 : vector<8x128xf32>
    %958 = vector.broadcast %28 : f32 to vector<8x128xf32>
    %959 = arith.mulf %826, %958 : vector<8x128xf32>
    %960 = arith.addf %957, %959 : vector<8x128xf32>
    %961 = vector.broadcast %29 : f32 to vector<8x128xf32>
    %962 = arith.mulf %823, %961 : vector<8x128xf32>
    %963 = arith.addf %960, %962 : vector<8x128xf32>
    %964 = vector.broadcast %30 : f32 to vector<8x128xf32>
    %965 = arith.mulf %824, %964 : vector<8x128xf32>
    %966 = arith.addf %963, %965 : vector<8x128xf32>
    %c6_83 = arith.constant 6 : index
    %967 = arith.index_cast %535 : i32 to index
    %c0_84 = arith.constant 0 : index
    %968 = vector.load %arg3[%c6_83, %967, %c0_84] : memref<8x16x128xf32, #tpu.memory_space<vmem>>, vector<1x8x128xf32>
    %969 = vector.shape_cast %968 : vector<1x8x128xf32> to vector<8x128xf32>
    %970 = arith.subf %966, %969 : vector<8x128xf32>
    %971 = arith.mulf %970, %970 : vector<8x128xf32>
    %972 = arith.addf %953, %971 : vector<8x128xf32>
    %973 = arith.mulf %966, %966 : vector<8x128xf32>
    %974 = arith.addf %955, %973 : vector<8x128xf32>
    %975 = vector.broadcast %31 : f32 to vector<8x128xf32>
    %976 = arith.mulf %825, %975 : vector<8x128xf32>
    %977 = vector.broadcast %32 : f32 to vector<8x128xf32>
    %978 = arith.mulf %826, %977 : vector<8x128xf32>
    %979 = arith.addf %976, %978 : vector<8x128xf32>
    %980 = vector.broadcast %33 : f32 to vector<8x128xf32>
    %981 = arith.mulf %823, %980 : vector<8x128xf32>
    %982 = arith.addf %979, %981 : vector<8x128xf32>
    %983 = vector.broadcast %34 : f32 to vector<8x128xf32>
    %984 = arith.mulf %824, %983 : vector<8x128xf32>
    %985 = arith.addf %982, %984 : vector<8x128xf32>
    %c7_85 = arith.constant 7 : index
    %986 = arith.index_cast %535 : i32 to index
    %c0_86 = arith.constant 0 : index
    %987 = vector.load %arg3[%c7_85, %986, %c0_86] : memref<8x16x128xf32, #tpu.memory_space<vmem>>, vector<1x8x128xf32>
    %988 = vector.shape_cast %987 : vector<1x8x128xf32> to vector<8x128xf32>
    %989 = arith.subf %985, %988 : vector<8x128xf32>
    %990 = arith.mulf %989, %989 : vector<8x128xf32>
    %991 = arith.addf %972, %990 : vector<8x128xf32>
    %992 = arith.mulf %985, %985 : vector<8x128xf32>
    %993 = arith.addf %974, %992 : vector<8x128xf32>
    %994 = arith.mulf %991, %832 : vector<8x128xf32>
    %cst_87 = arith.constant 1.000000e+00 : f32
    %995 = vector.broadcast %cst_87 : f32 to vector<8x128xf32>
    %996 = arith.subf %993, %995 : vector<8x128xf32>
    %cst_88 = arith.constant 0.000000e+00 : f32
    %997 = vector.broadcast %cst_88 : f32 to vector<8x128xf32>
    %998 = arith.maximumf %996, %997 : vector<8x128xf32>
    %999 = arith.addf %843, %994 : vector<8x128xf32>
    %1000 = arith.addf %999, %998 : vector<8x128xf32>
    %1001 = arith.mulf %1000, %835 : vector<8x128xf32>
    %1002 = arith.addf %533, %1001 : vector<8x128xf32>
    %c2_i32 = arith.constant 2 : i32
    %c0_89 = arith.constant 0 : index
    %c0_90 = arith.constant 0 : index
    %c0_91 = arith.constant 0 : index
    %1003 = vector.load %arg6[%c0_89, %c0_90, %c0_91] : memref<1x8x128xf32, #tpu.memory_space<vmem>>, vector<1x8x128xf32>
    %1004 = vector.shape_cast %1003 : vector<1x8x128xf32> to vector<8x128xf32>
    %1005 = arith.addf %1004, %1002 : vector<8x128xf32>
    %c0_92 = arith.constant 0 : index
    %c0_93 = arith.constant 0 : index
    %c0_94 = arith.constant 0 : index
    %1006 = vector.load %arg6[%c0_92, %c0_93, %c0_94] : memref<1x8x128xf32, #tpu.memory_space<vmem>>, vector<1x8x128xf32>
    %1007 = vector.shape_cast %1006 : vector<1x8x128xf32> to vector<8x128xf32>
    %1008 = vector.shape_cast %1005 : vector<8x128xf32> to vector<1x8x128xf32>
    tpu.vector_store %arg6[%c0_92, %c0_93, %c0_94], %1008 {strides = array<i32>} : memref<1x8x128xf32, #tpu.memory_space<vmem>>, vector<1x8x128xf32>,
    return
  }
  func.func @transform_0(%arg0: i32, %arg1: i32) -> (i32, i32, i32) {
    %c2_i32 = arith.constant 2 : i32
    %0 = arith.muli %arg0, %c2_i32 : i32
    %1 = arith.addi %0, %arg1 : i32
    %c0_i32 = arith.constant 0 : i32
    %c0_i32_0 = arith.constant 0 : i32
    %c0_i32_1 = arith.constant 0 : i32
    return %c0_i32, %1, %c0_i32_0 : i32, i32, i32
  }
  func.func @transform_1(%arg0: i32, %arg1: i32) -> (i32, i32, i32) {
    %c2_i32 = arith.constant 2 : i32
    %0 = arith.muli %arg0, %c2_i32 : i32
    %1 = arith.addi %0, %arg1 : i32
    %c0_i32 = arith.constant 0 : i32
    %c0_i32_0 = arith.constant 0 : i32
    %c0_i32_1 = arith.constant 0 : i32
    return %c0_i32, %1, %c0_i32_0 : i32, i32, i32
  }
  func.func @transform_2(%arg0: i32, %arg1: i32) -> (i32, i32, i32) {
    %c2_i32 = arith.constant 2 : i32
    %0 = arith.muli %arg0, %c2_i32 : i32
    %1 = arith.addi %0, %arg1 : i32
    %c0_i32 = arith.constant 0 : i32
    %c0_i32_0 = arith.constant 0 : i32
    %c0_i32_1 = arith.constant 0 : i32
    return %c0_i32, %1, %c0_i32_0 : i32, i32, i32
  }
  func.func @transform_3(%arg0: i32, %arg1: i32) -> i32 {
    %c0_i32 = arith.constant 0 : i32
    %c0_i32_0 = arith.constant 0 : i32
    return %c0_i32 : i32
  }
  func.func @transform_4(%arg0: i32, %arg1: i32) -> (i32, i32, i32) {
    %c0_i32 = arith.constant 0 : i32
    %c0_i32_0 = arith.constant 0 : i32
    %c0_i32_1 = arith.constant 0 : i32
    return %arg0, %c0_i32, %c0_i32_0 : i32, i32, i32
  }
}

</mosaic_0001>

<llo_original>
// kernel: _loss.1
$region0: #{_loss.1}
  #allocation0 [shape = 'u32[]', space=smem, size = 0x4, offset = 0x4, fixed_abs, tag = 'smem constant byte address 0x4 - core index']
  #allocation1 [shape = 'u32[144,128]{1,0:T(1,128)}', space=vmem, size = 0x12000, scoped, tag = 'internal scratch']
  #allocation9 [shape = 's32[]', space=sflag, size = 0x4, offset = 0, fixed_abs, tag = 'sflag constant byte address 0x0 - dummy sync flag']
  #allocation11 [shape = 's32[]', space=sflag, size = 0x4, offset = 0, fixed_abs, tag = 'sflag constant byte address 0x0 - dummy sync flag']
  #allocation13 [shape = 's32[]', space=sflag, size = 0x4, offset = 0, fixed_abs, tag = 'sflag constant byte address 0x0 - dummy sync flag']
  %s0 = inlined_call_operand.hbm [shape: f32[8,64,128], index: 0, kind: input, shape index: {}]
  %s1 = inlined_call_operand.hbm [shape: f32[8,64,128], index: 1, kind: input, shape index: {}]
  %s2 = inlined_call_operand.hbm [shape: f32[3,64,128], index: 2, kind: input, shape index: {}]
  %s3 = inlined_call_operand.vmem [shape: f32[61], index: 3, kind: input, shape index: {}]
  %s4 = inlined_call_operand.vmem [shape: f32[2,8,128], index: 4, kind: output, shape index: {}]
  %s5 = sld [smem:[#allocation0]]
  $region69: #{_loss.1} parent=0
    _
  %s7 = ssub.s32 1, %s5
  %s8 = scalar_select 0, %s7, %s5
  $region1: #{_loss.1} parent=0
    #allocation2 [shape = 'u8[131072]{0}', space=vmem, size = 0x20000, scoped, tag = 'input window, operand 0']
    #allocation3 [shape = 's32[2]{0}', space=sflag, size = 0x8, scoped, tag = 'scoped memory for _loss.1']
    #allocation4 [shape = 's32[2]{0}', space=sflag, size = 0x8, scoped, tag = 'scoped memory for _loss.1']
    #allocation5 [shape = 'u8[131072]{0}', space=vmem, size = 0x20000, scoped, tag = 'input window, operand 1']
    #allocation6 [shape = 's32[2]{0}', space=sflag, size = 0x8, scoped, tag = 'scoped memory for _loss.1']
    #allocation7 [shape = 'u8[49152]{0}', space=vmem, size = 0xc000, scoped, tag = 'input window, operand 2']
    #allocation8 [shape = 'u8[512]{0}', space=smem, size = 0x200, scoped, tag = 'input window, operand 3, single buffered']
    %9 = vsyncpa [#allocation3], 0
    %s10 = scalar_lea.sflag [#allocation3], 1
    %11 = vsyncpa %s10, 0
    %12 = vsyncpa [#allocation6], 0
    %s13 = scalar_lea.sflag [#allocation6], 1
    %14 = vsyncpa %s13, 0
    %15 = vsyncpa [#allocation4], 0
    loop: start=0, step=1, limit=6
    $region2: #{_loss.1} parent=1 // loop_pre_header
      _
    $region3: #{_loss.1} parent=1 // loop_header
      %s17 = sphi 0, %s21
      %p18 = scmp.ge.s32.totalorder %s17, 6
      %s24 = sphi 0, %s36
      %s25 = sphi 0, %s32
      %s26 = sphi 0, %s24
      %s27 = sphi 0, %s25
      %s28 = sphi 0, %s26
      %s29 = sphi 0, %s27
      %s43 = sphi 0, %s45
      %s46 = sphi 0, %s43
      %s47 = sphi 0, %s46
      %s63 = sphi 0, %s47
      %s73 = sphi 0, %s75
      %s76 = sphi 0, %s73
      %s77 = sphi 0, %s76
      %s93 = sphi 0, %s77
      %s103 = sphi 0, %s105
      %s106 = sphi 0, %s103
      %s107 = sphi 0, %s106
      %s123 = sphi 0, %s107
      %s127 = sphi 0, %s127
      %s129 = sphi 0, %s127
      %s130 = sphi 0, %s129
      %s144 = sphi 0, %s130
      %s150 = sphi 0, %s152
      %s153 = sphi 0, %s150
      %s154 = sphi 0, %s153
      %s170 = sphi 0, %s154
    $region4: #{_loss.1} parent=1 // loop_header_branch
      %20 = sbr.rel (%p18) target = $region8
    $region5: #{_loss.1} parent=1 // loop_body
      %s22 = ssub.s32 %s17, 1
      %s23 = ssub.s32 %s17, 2
      %s30 = sadd.s32 1, %s25
      %p31 = scmp.ge.s32.totalorder %s30, 2
      %s32 = scalar_select %p31, 0, %s30
      %s33 = sadd.s32 1, %s24
      %s34 = scalar_select %p31, %s33, %s24
      %p35 = scmp.ge.s32.totalorder %s34, 2
      %s36 = scalar_select %p35, 0, %s34
      %s37 = smul.u32 %s24, 2
      %s38 = sadd.s32 %s37, %s25
      %s39 = smul.u32 %s36, 2
      %s40 = sadd.s32 %s39, %s32
      %s41 = ssub.s32 %s38, %s40
      %p42 = scmp.eq.s32.totalorder %s41, 0
      %s44 = sadd.s32 %s43, 1
      %s45 = scalar_select %p42, %s43, %s44
      %p48 = pneg %p42
      %p49 = scmp.eq.s32.totalorder %s17, 3
      %p50 = por %p48, %p49
      %p51 = scmp.ne.s32.totalorder %s43, %s46
      %p52 = scmp.eq.s32.totalorder %s17, 0
      %p53 = por %p51, %p52
      %p54 = scmp.ne.s32.totalorder %s43, %s46
      %p55 = scmp.eq.s32.totalorder %s22, 3
      %p56 = por %p54, %p55
      %p57 = scmp.ne.s32.totalorder %s46, %s47
      %p58 = scmp.eq.s32.totalorder %s22, 0
      %p59 = por %p57, %p58
      %p60 = scmp.ne.s32.totalorder %s46, %s47
      %p61 = scmp.eq.s32.totalorder %s23, 3
      %p62 = por %p60, %p61
      %p64 = scmp.ne.s32.totalorder %s47, %s63
      %p65 = scmp.eq.s32.totalorder %s23, 0
      %p66 = por %p64, %p65
      %s67 = smul.u32 %s24, 2
      %s68 = sadd.s32 %s67, %s25
      %s69 = smul.u32 %s36, 2
      %s70 = sadd.s32 %s69, %s32
      %s71 = ssub.s32 %s68, %s70
      %p72 = scmp.eq.s32.totalorder %s71, 0
      %s74 = sadd.s32 %s73, 1
      %s75 = scalar_select %p72, %s73, %s74
      %p78 = pneg %p72
      %p79 = scmp.eq.s32.totalorder %s17, 3
      %p80 = por %p78, %p79
      %p81 = scmp.ne.s32.totalorder %s73, %s76
      %p82 = scmp.eq.s32.totalorder %s17, 0
      %p83 = por %p81, %p82
      %p84 = scmp.ne.s32.totalorder %s73, %s76
      %p85 = scmp.eq.s32.totalorder %s22, 3
      %p86 = por %p84, %p85
      %p87 = scmp.ne.s32.totalorder %s76, %s77
      %p88 = scmp.eq.s32.totalorder %s22, 0
      %p89 = por %p87, %p88
      %p90 = scmp.ne.s32.totalorder %s76, %s77
      %p91 = scmp.eq.s32.totalorder %s23, 3
      %p92 = por %p90, %p91
      %p94 = scmp.ne.s32.totalorder %s77, %s93
      %p95 = scmp.eq.s32.totalorder %s23, 0
      %p96 = por %p94, %p95
      %s97 = smul.u32 %s24, 2
      %s98 = sadd.s32 %s97, %s25
      %s99 = smul.u32 %s36, 2
      %s100 = sadd.s32 %s99, %s32
      %s101 = ssub.s32 %s98, %s100
      %p102 = scmp.eq.s32.totalorder %s101, 0
      %s104 = sadd.s32 %s103, 1
      %s105 = scalar_select %p102, %s103, %s104
      %p108 = pneg %p102
      %p109 = scmp.eq.s32.totalorder %s17, 3
      %p110 = por %p108, %p109
      %p111 = scmp.ne.s32.totalorder %s103, %s106
      %p112 = scmp.eq.s32.totalorder %s17, 0
      %p113 = por %p111, %p112
      %p114 = scmp.ne.s32.totalorder %s103, %s106
      %p115 = scmp.eq.s32.totalorder %s22, 3
      %p116 = por %p114, %p115
      %p117 = scmp.ne.s32.totalorder %s106, %s107
      %p118 = scmp.eq.s32.totalorder %s22, 0
      %p119 = por %p117, %p118
      %p120 = scmp.ne.s32.totalorder %s106, %s107
      %p121 = scmp.eq.s32.totalorder %s23, 3
      %p122 = por %p120, %p121
      %p124 = scmp.ne.s32.totalorder %s107, %s123
      %p125 = scmp.eq.s32.totalorder %s23, 0
      %p126 = por %p124, %p125
      %s128 = sadd.s32 %s127, 1
      %p131 = scmp.eq.s32.totalorder %s17, 3
      %p132 = scmp.ne.s32.totalorder %s127, %s129
      %p133 = scmp.eq.s32.totalorder %s17, 0
      %p134 = por %p132, %p133
      %p135 = scmp.ne.s32.totalorder %s127, %s129
      %p136 = scmp.eq.s32.totalorder %s22, 3
      %p137 = por %p135, %p136
      %p138 = scmp.ne.s32.totalorder %s129, %s130
      %p139 = scmp.eq.s32.totalorder %s22, 0
      %p140 = por %p138, %p139
      %p141 = scmp.ne.s32.totalorder %s129, %s130
      %p142 = scmp.eq.s32.totalorder %s23, 3
      %p143 = por %p141, %p142
      %p145 = scmp.ne.s32.totalorder %s130, %s144
      %p146 = scmp.eq.s32.totalorder %s23, 0
      %p147 = por %p145, %p146
      %s148 = ssub.s32 %s24, %s36
      %p149 = scmp.eq.s32.totalorder %s148, 0
      %s151 = sadd.s32 %s150, 1
      %s152 = scalar_select %p149, %s150, %s151
      %p155 = pneg %p149
      %p156 = scmp.eq.s32.totalorder %s17, 3
      %p157 = por %p155, %p156
      %p158 = scmp.ne.s32.totalorder %s150, %s153
      %p159 = scmp.eq.s32.totalorder %s17, 0
      %p160 = por %p158, %p159
      %p161 = scmp.ne.s32.totalorder %s150, %s153
      %p162 = scmp.eq.s32.totalorder %s22, 3
      %p163 = por %p161, %p162
      %p164 = scmp.ne.s32.totalorder %s153, %s154
      %p165 = scmp.eq.s32.totalorder %s22, 0
      %p166 = por %p164, %p165
      %p167 = scmp.ne.s32.totalorder %s153, %s154
      %p168 = scmp.eq.s32.totalorder %s23, 3
      %p169 = por %p167, %p168
      %p171 = scmp.ne.s32.totalorder %s154, %s170
      %p172 = scmp.eq.s32.totalorder %s23, 0
      %p173 = por %p171, %p172
      %p174 = scmp.le.s32.totalorder 1, %s17
      %p175 = scmp.lt.s32.totalorder %s17, 5
      %p176 = pnand %p174, %p175
      %p177 = pneg %p176
      // Predicated region
      $region9: #{_loss.1} parent=5 // pred_check
        _
      $region10: #{_loss.1} parent=5 // pred_check_branch
        %179 = sbr.rel (%p176) target = $region12
      $region11: #{_loss.1} parent=5 // pred_region
        %s180 = ssub.s32 %s17, 1
        // Predicated region
        $region13: #{_loss.1} parent=11 // pred_check
          %p181 = pneg %p140
        $region14: #{_loss.1} parent=11 // pred_check_branch
          %183 = sbr.rel (%p181) target = $region16
        $region15: #{_loss.1} parent=11 // pred_region
          %s185 = ssub.s32 16, 16
          %186 = vsyncadd [#allocation4], %s185
          %s188 = sshll.u32 %s3, 4
          %s189 = int_to_ptr.vmem [resolvable:$true] %s188
          %191 = dma.vmem_to_smem %s189, 16, [#allocation8], [#allocation4]
        $region16: #{_loss.1} parent=11 // pred_fallthru
          _
      $region12: #{_loss.1} parent=5 // pred_fallthru
        _
      %p192 = scmp.lt.s32.totalorder %s17, 4
      // Predicated region
      $region17: #{_loss.1} parent=5 // pred_check
        %p193 = pneg %p192
      $region18: #{_loss.1} parent=5 // pred_check_branch
        %195 = sbr.rel (%p193) target = $region20
      $region19: #{_loss.1} parent=5 // pred_region
        // Predicated region
        $region21: #{_loss.1} parent=19 // pred_check
          %p196 = pneg %p53
        $region22: #{_loss.1} parent=19 // pred_check_branch
          %198 = sbr.rel (%p196) target = $region24
        $region23: #{_loss.1} parent=19 // pred_region
          #allocation10 [shape = 'u32[6]{0}', space=smem, size = 0x18, scoped, tag = 'DMA stride descriptor']
          %s199 = sand.u32 %s43, 1
          %s200 = scalar_lea.sflag [#allocation3], %s199
          %s201 = sand.u32 %s43, 1
          %s202 = smul.addr %s201, 128
          %s203 = scalar_lea.vmem [#allocation2], %s202
          %s204 = smul.u32 %s24, 2
          %s205 = sadd.s32 %s204, %s25
          %s206 = smul.u32 2, %s205
          %s208 = ssub.s32 2048, 2048
          %209 = vsyncadd %s200, %s208
          %s210 = smul.addr %s206, 128
          %s211 = scalar_lea.hbm %s0, %s210
          %s213 = sshll.u32 1, 14
          %s214 = sxor.u32 4294967295, %s213
          %s216 = sld [smem:[#allocation0]]
          %s217 = sadd.s32 2, %s216
          %s219 = sshll.u32 7, 26
          %s220 = sxor.u32 4294967295, %s219
          %s221 = sand.u32 0, %s220
          %s222 = sshll.u32 %s217, 26
          %s223 = sor.u32 %s221, %s222
          %s224 = sshll.u32 %s203, 4
          %s225 = int_to_ptr.vmem [resolvable:$true] %s224
          %231 = sst [smem:[#allocation10]] 1024
          %s232 = scalar_lea.smem [#allocation10], 1
          %233 = sst [smem:[%s232]] 256
          %s234 = scalar_lea.smem [#allocation10], 2
          %235 = sst [smem:[%s234]] 2
          %s236 = scalar_lea.smem [#allocation10], 3
          %237 = sst [smem:[%s236]] 128
          %s238 = scalar_lea.smem [#allocation10], 4
          %239 = sst [smem:[%s238]] 128
          %s240 = scalar_lea.smem [#allocation10], 5
          %241 = sst [smem:[%s240]] 8
          %243 = dma.general %s211, 2048, %s225, %s200, [#allocation9], [#allocation10], %s223, 0
        $region24: #{_loss.1} parent=19 // pred_fallthru
          _
        // Predicated region
        $region25: #{_loss.1} parent=19 // pred_check
          %p244 = pneg %p83
        $region26: #{_loss.1} parent=19 // pred_check_branch
          %246 = sbr.rel (%p244) target = $region28
        $region27: #{_loss.1} parent=19 // pred_region
          #allocation12 [shape = 'u32[6]{0}', space=smem, size = 0x18, scoped, tag = 'DMA stride descriptor']
          %s247 = sand.u32 %s17, 1
          %s248 = scalar_lea.sflag [#allocation6], %s247
          %s249 = sand.u32 %s73, 1
          %s250 = smul.addr %s249, 128
          %s251 = scalar_lea.vmem [#allocation5], %s250
          %s252 = smul.u32 %s24, 2
          %s253 = sadd.s32 %s252, %s25
          %s254 = smul.u32 2, %s253
          %s256 = ssub.s32 2048, 2048
          %257 = vsyncadd %s248, %s256
          %s258 = smul.addr %s254, 128
          %s259 = scalar_lea.hbm %s1, %s258
          %s261 = sshll.u32 1, 14
          %s262 = sxor.u32 4294967295, %s261
          %s264 = sld [smem:[#allocation0]]
          %s265 = sadd.s32 2, %s264
          %s267 = sshll.u32 7, 26
          %s268 = sxor.u32 4294967295, %s267
          %s269 = sand.u32 0, %s268
          %s270 = sshll.u32 %s265, 26
          %s271 = sor.u32 %s269, %s270
          %s272 = sshll.u32 %s251, 4
          %s273 = int_to_ptr.vmem [resolvable:$true] %s272
          %279 = sst [smem:[#allocation12]] 1024
          %s280 = scalar_lea.smem [#allocation12], 1
          %281 = sst [smem:[%s280]] 256
          %s282 = scalar_lea.smem [#allocation12], 2
          %283 = sst [smem:[%s282]] 2
          %s284 = scalar_lea.smem [#allocation12], 3
          %285 = sst [smem:[%s284]] 128
          %s286 = scalar_lea.smem [#allocation12], 4
          %287 = sst [smem:[%s286]] 128
          %s288 = scalar_lea.smem [#allocation12], 5
          %289 = sst [smem:[%s288]] 8
          %291 = dma.general %s259, 2048, %s273, %s248, [#allocation11], [#allocation12], %s271, 0
        $region28: #{_loss.1} parent=19 // pred_fallthru
          _
        // Predicated region
        $region29: #{_loss.1} parent=19 // pred_check
          %p292 = pneg %p113
        $region30: #{_loss.1} parent=19 // pred_check_branch
          %294 = sbr.rel (%p292) target = $region32
        $region31: #{_loss.1} parent=19 // pred_region
          #allocation14 [shape = 'u32[6]{0}', space=smem, size = 0x18, scoped, tag = 'DMA stride descriptor']
          %s295 = sand.u32 %s17, 1
          %s296 = scalar_lea.sflag [#allocation6], %s295
          %s297 = sand.u32 %s103, 1
          %s298 = smul.addr %s297, 48
          %s299 = scalar_lea.vmem [#allocation7], %s298
          %s300 = smul.u32 %s24, 2
          %s301 = sadd.s32 %s300, %s25
          %s302 = smul.u32 2, %s301
          %s304 = ssub.s32 768, 768
          %305 = vsyncadd %s296, %s304
          %s306 = smul.addr %s302, 128
          %s307 = scalar_lea.hbm %s2, %s306
          %s309 = sshll.u32 1, 14
          %s310 = sxor.u32 4294967295, %s309
          %s312 = sld [smem:[#allocation0]]
          %s313 = sadd.s32 2, %s312
          %s315 = sshll.u32 7, 26
          %s316 = sxor.u32 4294967295, %s315
          %s317 = sand.u32 0, %s316
          %s318 = sshll.u32 %s313, 26
          %s319 = sor.u32 %s317, %s318
          %s320 = sshll.u32 %s299, 4
          %s321 = int_to_ptr.vmem [resolvable:$true] %s320
          %327 = sst [smem:[#allocation14]] 1024
          %s328 = scalar_lea.smem [#allocation14], 1
          %329 = sst [smem:[%s328]] 256
          %s330 = scalar_lea.smem [#allocation14], 2
          %331 = sst [smem:[%s330]] 2
          %s332 = scalar_lea.smem [#allocation14], 3
          %333 = sst [smem:[%s332]] 128
          %s334 = scalar_lea.smem [#allocation14], 4
          %335 = sst [smem:[%s334]] 128
          %s336 = scalar_lea.smem [#allocation14], 5
          %337 = sst [smem:[%s336]] 8
          %339 = dma.general %s307, 768, %s321, %s296, [#allocation13], [#allocation14], %s319, 0
        $region32: #{_loss.1} parent=19 // pred_fallthru
          _
      $region20: #{_loss.1} parent=5 // pred_fallthru
        _
      %p340 = scmp.le.s32.totalorder 1, %s17
      %p341 = scmp.lt.s32.totalorder %s17, 5
      %p342 = pnand %p340, %p341
      %p343 = pneg %p342
      // Predicated region
      $region33: #{_loss.1} parent=5 // pred_check
        _
      $region34: #{_loss.1} parent=5 // pred_check_branch
        %345 = sbr.rel (%p342) target = $region36
      $region35: #{_loss.1} parent=5 // pred_region
        %s346 = ssub.s32 %s17, 1
        %s347 = sand.u32 %s46, 1
        %s348 = scalar_lea.sflag [#allocation3], %s347
        %s349 = sand.u32 %s46, 1
        %s350 = smul.addr %s349, 128
        %s351 = scalar_lea.vmem [#allocation2], %s350
        // Predicated region
        $region37: #{_loss.1} parent=35 // pred_check
          %p352 = pneg %p59
        $region38: #{_loss.1} parent=35 // pred_check_branch
          %354 = sbr.rel (%p352) target = $region40
        $region39: #{_loss.1} parent=35 // pred_region
          %355 = dma.done %s348, 2048
        $region40: #{_loss.1} parent=35 // pred_fallthru
          _
        %s356 = sand.u32 %s22, 1
        %s357 = scalar_lea.sflag [#allocation6], %s356
        %s358 = sand.u32 %s76, 1
        %s359 = smul.addr %s358, 128
        %s360 = scalar_lea.vmem [#allocation5], %s359
        // Predicated region
        $region41: #{_loss.1} parent=35 // pred_check
          %p361 = pneg %p89
        $region42: #{_loss.1} parent=35 // pred_check_branch
          %363 = sbr.rel (%p361) target = $region44
        $region43: #{_loss.1} parent=35 // pred_region
          %364 = dma.done %s357, 2048
        $region44: #{_loss.1} parent=35 // pred_fallthru
          _
        %s365 = sand.u32 %s22, 1
        %s366 = scalar_lea.sflag [#allocation6], %s365
        %s367 = sand.u32 %s106, 1
        %s368 = smul.addr %s367, 48
        %s369 = scalar_lea.vmem [#allocation7], %s368
        // Predicated region
        $region45: #{_loss.1} parent=35 // pred_check
          %p370 = pneg %p119
        $region46: #{_loss.1} parent=35 // pred_check_branch
          %372 = sbr.rel (%p370) target = $region48
        $region47: #{_loss.1} parent=35 // pred_region
          %373 = dma.done %s366, 768
        $region48: #{_loss.1} parent=35 // pred_fallthru
          _
        // Predicated region
        $region49: #{_loss.1} parent=35 // pred_check
          %p374 = pneg %p140
        $region50: #{_loss.1} parent=35 // pred_check_branch
          %376 = sbr.rel (%p374) target = $region52
        $region51: #{_loss.1} parent=35 // pred_region
          %377 = dma.done [#allocation4], 16
        $region52: #{_loss.1} parent=35 // pred_fallthru
          _
        %378 = sfence
        %s379 = sand.u32 %s46, 1
        %s380 = scalar_lea.sflag [#allocation3], %s379
        %s381 = sand.u32 %s46, 1
        %s382 = smul.addr %s381, 128
        %s383 = scalar_lea.vmem [#allocation2], %s382
        %p384 = pneg %p59
        %p385 = pneg %p56
        %s386 = sand.u32 %s22, 1
        %s387 = scalar_lea.sflag [#allocation6], %s386
        %s388 = sand.u32 %s76, 1
        %s389 = smul.addr %s388, 128
        %s390 = scalar_lea.vmem [#allocation5], %s389
        %p391 = pneg %p89
        %p392 = pneg %p86
        %s393 = sand.u32 %s22, 1
        %s394 = scalar_lea.sflag [#allocation6], %s393
        %s395 = sand.u32 %s106, 1
        %s396 = smul.addr %s395, 48
        %s397 = scalar_lea.vmem [#allocation7], %s396
        %p398 = pneg %p119
        %p399 = pneg %p116
        %p400 = pneg %p140
        %p401 = pneg %p137
        %p402 = pneg %p166
        %p403 = pneg %p163
        %p404 = scmp.lt.s32.totalorder %s26, 1
        %s405 = scalar_select %p404, %s26, 1
        %s406 = smul.addr %s405, 8
        %s407 = scalar_lea.vmem %s4, %s406
        %s408 = smul.u32 %s26, 2
        %s409 = sadd.s32 %s408, %s27
        %s410 = smul.u32 2, %s409
        %s411 = smul.u32 %s26, 2
        %s412 = sadd.s32 %s411, %s27
        %s413 = smul.u32 2, %s412
        %s414 = smul.u32 %s26, 2
        %s415 = sadd.s32 %s414, %s27
        %s416 = smul.u32 2, %s415
        %p417 = scmp.lt.s32.totalorder %s26, 1
        %s418 = scalar_select %p417, %s26, 1
        %s419 = smul.addr %s418, 8
        %s420 = scalar_lea.vmem %s4, %s419
        %p421 = scmp.eq.s32.totalorder %s27, 0
        // Predicated region
        $region53: #{_loss.1} parent=35 // pred_check
          %p422 = pneg %p421
        $region54: #{_loss.1} parent=35 // pred_check_branch
          %424 = sbr.rel (%p422) target = $region56
        $region55: #{_loss.1} parent=35 // pred_region
          %425 = vst [vmem:[%s420] sm:$0xff] 0.0
        $region56: #{_loss.1} parent=35 // pred_fallthru
          _
        %s426 = sld [smem:[#allocation8]]
        %s427 = sld [smem:[#allocation8 + $0x1]]
        %s428 = sld [smem:[#allocation8 + $0x2]]
        %s429 = sld [smem:[#allocation8 + $0x3]]
        %s430 = sld [smem:[#allocation8 + $0x4]]
        %s431 = sld [smem:[#allocation8 + $0x5]]
        %s432 = sld [smem:[#allocation8 + $0x6]]
        %s433 = sld [smem:[#allocation8 + $0x7]]
        %s434 = sld [smem:[#allocation8 + $0x8]]
        %s435 = sld [smem:[#allocation8 + $0x9]]
        %s436 = sld [smem:[#allocation8 + $0xa]]
        %s437 = sld [smem:[#allocation8 + $0xb]]
        %s438 = sld [smem:[#allocation8 + $0xc]]
        %s439 = sld [smem:[#allocation8 + $0xd]]
        %s440 = sld [smem:[#allocation8 + $0xe]]
        %s441 = sld [smem:[#allocation8 + $0xf]]
        %s442 = sld [smem:[#allocation8 + $0x10]]
        %s443 = sld [smem:[#allocation8 + $0x11]]
        %s444 = sld [smem:[#allocation8 + $0x12]]
        %s445 = sld [smem:[#allocation8 + $0x13]]
        %s446 = sld [smem:[#allocation8 + $0x14]]
        %s447 = sld [smem:[#allocation8 + $0x15]]
        %s448 = sld [smem:[#allocation8 + $0x16]]
        %s449 = sld [smem:[#allocation8 + $0x17]]
        %s450 = sld [smem:[#allocation8 + $0x18]]
        %s451 = sld [smem:[#allocation8 + $0x19]]
        %s452 = sld [smem:[#allocation8 + $0x1a]]
        %s453 = sld [smem:[#allocation8 + $0x1b]]
        %s454 = sld [smem:[#allocation8 + $0x1c]]
        %s455 = sld [smem:[#allocation8 + $0x1d]]
        %s456 = sld [smem:[#allocation8 + $0x1e]]
        %s457 = sld [smem:[#allocation8 + $0x1f]]
        %s458 = sld [smem:[#allocation8 + $0x20]]
        %s459 = sld [smem:[#allocation8 + $0x21]]
        %s460 = sld [smem:[#allocation8 + $0x22]]
        %s461 = sld [smem:[#allocation8 + $0x23]]
        %s462 = sld [smem:[#allocation8 + $0x24]]
        %s463 = sld [smem:[#allocation8 + $0x25]]
        %s464 = sld [smem:[#allocation8 + $0x26]]
        %s465 = sld [smem:[#allocation8 + $0x27]]
        %s466 = sld [smem:[#allocation8 + $0x28]]
        %s467 = sld [smem:[#allocation8 + $0x29]]
        %s468 = sld [smem:[#allocation8 + $0x2a]]
        %s469 = sld [smem:[#allocation8 + $0x2b]]
        %s470 = sld [smem:[#allocation8 + $0x2c]]
        %s471 = sld [smem:[#allocation8 + $0x2d]]
        %s472 = sld [smem:[#allocation8 + $0x2e]]
        %s473 = sld [smem:[#allocation8 + $0x2f]]
        %s474 = sld [smem:[#allocation8 + $0x30]]
        %s475 = sld [smem:[#allocation8 + $0x31]]
        %s476 = sld [smem:[#allocation8 + $0x32]]
        %s477 = sld [smem:[#allocation8 + $0x33]]
        %s478 = sld [smem:[#allocation8 + $0x34]]
        %s479 = sld [smem:[#allocation8 + $0x35]]
        %s480 = sld [smem:[#allocation8 + $0x36]]
        %s481 = sld [smem:[#allocation8 + $0x37]]
        %s482 = sld [smem:[#allocation8 + $0x38]]
        %s483 = sld [smem:[#allocation8 + $0x39]]
        %s484 = sld [smem:[#allocation8 + $0x3a]]
        %s485 = sld [smem:[#allocation8 + $0x3b]]
        %s486 = sld [smem:[#allocation8 + $0x3c]]
        %v487 = vld [vmem:[%s351] sm:$0xff]
        %s488 = sadd.s32 0, 16
        %s489 = scalar_lea.vmem %s351, %s488 [#allocation2]
        %v490 = vld [vmem:[%s489] sm:$0xff]
        %s491 = sadd.s32 0, 32
        %s492 = scalar_lea.vmem %s351, %s491 [#allocation2]
        %v493 = vld [vmem:[%s492] sm:$0xff]
        %s494 = sadd.s32 0, 48
        %s495 = scalar_lea.vmem %s351, %s494 [#allocation2]
        %v496 = vld [vmem:[%s495] sm:$0xff]
        %s497 = sadd.s32 0, 64
        %s498 = scalar_lea.vmem %s351, %s497 [#allocation2]
        %v499 = vld [vmem:[%s498] sm:$0xff]
        %s500 = sadd.s32 0, 80
        %s501 = scalar_lea.vmem %s351, %s500 [#allocation2]
        %v502 = vld [vmem:[%s501] sm:$0xff]
        %s503 = sadd.s32 0, 96
        %s504 = scalar_lea.vmem %s351, %s503 [#allocation2]
        %v505 = vld [vmem:[%s504] sm:$0xff]
        %s506 = sadd.s32 0, 112
        %s507 = scalar_lea.vmem %s351, %s506 [#allocation2]
        %v508 = vld [vmem:[%s507] sm:$0xff]
        %v509 = vstv %s426
        %v510 = vmul.f32 %v487, %v509
        %v511 = vstv %s430
        %v512 = vmul.f32 %v490, %v511
        %v513 = vadd.f32 %v510, %v512
        %v514 = vstv %s434
        %v515 = vmul.f32 %v493, %v514
        %v516 = vadd.f32 %v513, %v515
        %v517 = vstv %s438
        %v518 = vmul.f32 %v496, %v517
        %v519 = vadd.f32 %v516, %v518
        %v520 = vstv %s442
        %v521 = vmul.f32 %v499, %v520
        %v522 = vadd.f32 %v519, %v521
        %v523 = vstv %s446
        %v524 = vmul.f32 %v502, %v523
        %v525 = vadd.f32 %v522, %v524
        %v526 = vstv %s450
        %v527 = vmul.f32 %v505, %v526
        %v528 = vadd.f32 %v525, %v527
        %v529 = vstv %s454
        %v530 = vmul.f32 %v508, %v529
        %v531 = vadd.f32 %v528, %v530
        %v532 = vstv %s458
        %v533 = vadd.f32 %v531, %v532
        %v534 = vstv %s427
        %v535 = vmul.f32 %v487, %v534
        %v536 = vstv %s431
        %v537 = vmul.f32 %v490, %v536
        %v538 = vadd.f32 %v535, %v537
        %v539 = vstv %s435
        %v540 = vmul.f32 %v493, %v539
        %v541 = vadd.f32 %v538, %v540
        %v542 = vstv %s439
        %v543 = vmul.f32 %v496, %v542
        %v544 = vadd.f32 %v541, %v543
        %v545 = vstv %s443
        %v546 = vmul.f32 %v499, %v545
        %v547 = vadd.f32 %v544, %v546
        %v548 = vstv %s447
        %v549 = vmul.f32 %v502, %v548
        %v550 = vadd.f32 %v547, %v549
        %v551 = vstv %s451
        %v552 = vmul.f32 %v505, %v551
        %v553 = vadd.f32 %v550, %v552
        %v554 = vstv %s455
        %v555 = vmul.f32 %v508, %v554
        %v556 = vadd.f32 %v553, %v555
        %v557 = vstv %s459
        %v558 = vadd.f32 %v556, %v557
        %v559 = vstv %s428
        %v560 = vmul.f32 %v487, %v559
        %v561 = vstv %s432
        %v562 = vmul.f32 %v490, %v561
        %v563 = vadd.f32 %v560, %v562
        %v564 = vstv %s436
        %v565 = vmul.f32 %v493, %v564
        %v566 = vadd.f32 %v563, %v565
        %v567 = vstv %s440
        %v568 = vmul.f32 %v496, %v567
        %v569 = vadd.f32 %v566, %v568
        %v570 = vstv %s444
        %v571 = vmul.f32 %v499, %v570
        %v572 = vadd.f32 %v569, %v571
        %v573 = vstv %s448
        %v574 = vmul.f32 %v502, %v573
        %v575 = vadd.f32 %v572, %v574
        %v576 = vstv %s452
        %v577 = vmul.f32 %v505, %v576
        %v578 = vadd.f32 %v575, %v577
        %v579 = vstv %s456
        %v580 = vmul.f32 %v508, %v579
        %v581 = vadd.f32 %v578, %v580
        %v582 = vstv %s460
        %v583 = vadd.f32 %v581, %v582
        %v584 = vstv %s429
        %v585 = vmul.f32 %v487, %v584
        %v586 = vstv %s433
        %v587 = vmul.f32 %v490, %v586
        %v588 = vadd.f32 %v585, %v587
        %v589 = vstv %s437
        %v590 = vmul.f32 %v493, %v589
        %v591 = vadd.f32 %v588, %v590
        %v592 = vstv %s441
        %v593 = vmul.f32 %v496, %v592
        %v594 = vadd.f32 %v591, %v593
        %v595 = vstv %s445
        %v596 = vmul.f32 %v499, %v595
        %v597 = vadd.f32 %v594, %v596
        %v598 = vstv %s449
        %v599 = vmul.f32 %v502, %v598
        %v600 = vadd.f32 %v597, %v599
        %v601 = vstv %s453
        %v602 = vmul.f32 %v505, %v601
        %v603 = vadd.f32 %v600, %v602
        %v604 = vstv %s457
        %v605 = vmul.f32 %v508, %v604
        %v606 = vadd.f32 %v603, %v605
        %v607 = vstv %s461
        %v608 = vadd.f32 %v606, %v607
        %vm609 = vcmp.le.f32.partialorder %v533, %v558
        %v610 = vsel %vm609, %v533, %v558
        %v611 = vsel %vm609, %v558, %v533
        %vm612 = vcmp.le.f32.partialorder %v583, %v608
        %v613 = vsel %vm612, %v583, %v608
        %v614 = vsel %vm612, %v608, %v583
        %vm615 = vcmp.le.f32.partialorder %v610, %v613
        %v616 = vsel %vm615, %v610, %v613
        %v617 = vsel %vm615, %v613, %v610
        %vm618 = vcmp.le.f32.partialorder %v611, %v614
        %v619 = vsel %vm618, %v611, %v614
        %v620 = vsel %vm618, %v614, %v611
        %vm621 = vcmp.le.f32.partialorder %v619, %v617
        %v622 = vsel %vm621, %v619, %v617
        %v623 = vsel %vm621, %v617, %v619
        %v624 = vstv %s462
        %v625 = vmul.f32 %v616, %v624
        %v626 = vstv %s466
        %v627 = vmul.f32 %v622, %v626
        %v628 = vadd.f32 %v625, %v627
        %v629 = vstv %s470
        %v630 = vmul.f32 %v623, %v629
        %v631 = vadd.f32 %v628, %v630
        %v632 = vstv %s474
        %v633 = vmul.f32 %v620, %v632
        %v634 = vadd.f32 %v631, %v633
        %v635 = vstv %s478
        %v636 = vadd.f32 %v634, %v635
        %v637 = vstv %s463
        %v638 = vmul.f32 %v616, %v637
        %v639 = vstv %s467
        %v640 = vmul.f32 %v622, %v639
        %v641 = vadd.f32 %v638, %v640
        %v642 = vstv %s471
        %v643 = vmul.f32 %v623, %v642
        %v644 = vadd.f32 %v641, %v643
        %v645 = vstv %s475
        %v646 = vmul.f32 %v620, %v645
        %v647 = vadd.f32 %v644, %v646
        %v648 = vstv %s479
        %v649 = vadd.f32 %v647, %v648
        %v650 = vstv %s464
        %v651 = vmul.f32 %v616, %v650
        %v652 = vstv %s468
        %v653 = vmul.f32 %v622, %v652
        %v654 = vadd.f32 %v651, %v653
        %v655 = vstv %s472
        %v656 = vmul.f32 %v623, %v655
        %v657 = vadd.f32 %v654, %v656
        %v658 = vstv %s476
        %v659 = vmul.f32 %v620, %v658
        %v660 = vadd.f32 %v657, %v659
        %v661 = vstv %s480
        %v662 = vadd.f32 %v660, %v661
        %v663 = vstv %s465
        %v664 = vmul.f32 %v616, %v663
        %v665 = vstv %s469
        %v666 = vmul.f32 %v622, %v665
        %v667 = vadd.f32 %v664, %v666
        %v668 = vstv %s473
        %v669 = vmul.f32 %v623, %v668
        %v670 = vadd.f32 %v667, %v669
        %v671 = vstv %s477
        %v672 = vmul.f32 %v620, %v671
        %v673 = vadd.f32 %v670, %v672
        %v674 = vstv %s481
        %v675 = vadd.f32 %v673, %v674
        %vm676 = vcmp.le.f32.partialorder %v636, %v649
        %v677 = vsel %vm676, %v636, %v649
        %v678 = vsel %vm676, %v649, %v636
        %vm679 = vcmp.le.f32.partialorder %v662, %v675
        %v680 = vsel %vm679, %v662, %v675
        %v681 = vsel %vm679, %v675, %v662
        %vm682 = vcmp.le.f32.partialorder %v677, %v680
        %v683 = vsel %vm682, %v677, %v680
        %v684 = vsel %vm682, %v680, %v677
        %vm685 = vcmp.le.f32.partialorder %v678, %v681
        %v686 = vsel %vm685, %v678, %v681
        %v687 = vsel %vm685, %v681, %v678
        %vm688 = vcmp.le.f32.partialorder %v686, %v684
        %v689 = vsel %vm688, %v686, %v684
        %v690 = vsel %vm688, %v684, %v686
        %v691 = vstv %s482
        %v692 = vmul.f32 %v683, %v691
        %v693 = vstv %s483
        %v694 = vmul.f32 %v689, %v693
        %v695 = vadd.f32 %v692, %v694
        %v696 = vstv %s484
        %v697 = vmul.f32 %v690, %v696
        %v698 = vadd.f32 %v695, %v697
        %v699 = vstv %s485
        %v700 = vmul.f32 %v687, %v699
        %v701 = vadd.f32 %v698, %v700
        %v702 = vstv %s486
        %v703 = vadd.f32 %v701, %v702
        %v704 = vsel %vm688, %v693, %v696
        %v705 = vsel %vm688, %v696, %v693
        %v706 = vsel %vm685, %v704, %v699
        %v707 = vsel %vm685, %v699, %v704
        %v708 = vsel %vm682, %v691, %v705
        %v709 = vsel %vm682, %v705, %v691
        %v710 = vsel %vm679, %v709, %v707
        %v711 = vsel %vm679, %v707, %v709
        %v712 = vsel %vm676, %v708, %v706
        %v713 = vsel %vm676, %v706, %v708
        %v714 = vmul.f32 %v712, %v624
        %v715 = vmul.f32 %v713, %v637
        %v716 = vadd.f32 %v714, %v715
        %v717 = vmul.f32 %v710, %v650
        %v718 = vadd.f32 %v716, %v717
        %v719 = vmul.f32 %v711, %v663
        %v720 = vadd.f32 %v718, %v719
        %v721 = vmul.f32 %v712, %v626
        %v722 = vmul.f32 %v713, %v639
        %v723 = vadd.f32 %v721, %v722
        %v724 = vmul.f32 %v710, %v652
        %v725 = vadd.f32 %v723, %v724
        %v726 = vmul.f32 %v711, %v665
        %v727 = vadd.f32 %v725, %v726
        %v728 = vmul.f32 %v712, %v629
        %v729 = vmul.f32 %v713, %v642
        %v730 = vadd.f32 %v728, %v729
        %v731 = vmul.f32 %v710, %v655
        %v732 = vadd.f32 %v730, %v731
        %v733 = vmul.f32 %v711, %v668
        %v734 = vadd.f32 %v732, %v733
        %v735 = vmul.f32 %v712, %v632
        %v736 = vmul.f32 %v713, %v645
        %v737 = vadd.f32 %v735, %v736
        %v738 = vmul.f32 %v710, %v658
        %v739 = vadd.f32 %v737, %v738
        %v740 = vmul.f32 %v711, %v671
        %v741 = vadd.f32 %v739, %v740
        %v742 = vsel %vm621, %v727, %v734
        %v743 = vsel %vm621, %v734, %v727
        %v744 = vsel %vm618, %v742, %v741
        %v745 = vsel %vm618, %v741, %v742
        %v746 = vsel %vm615, %v720, %v743
        %v747 = vsel %vm615, %v743, %v720
        %v748 = vsel %vm612, %v747, %v745
        %v749 = vsel %vm612, %v745, %v747
        %v750 = vsel %vm609, %v746, %v744
        %v751 = vsel %vm609, %v744, %v746
        %v752 = vld [vmem:[%s369] sm:$0xff]
        %s753 = scalar_lea.vmem %s369, %s488 [#allocation7]
        %v754 = vld [vmem:[%s753] sm:$0xff]
        %s755 = scalar_lea.vmem %s369, %s491 [#allocation7]
        %v756 = vld [vmem:[%s755] sm:$0xff]
        %v757 = vmul.f32 %v754, 2.0
        %v758 = vsub.f32 %v757, 1.0
        %v759 = vsub.f32 %v703, %v752
        %v760 = vmul.f32 %v759, %v758
        %v761 = vmax.f32 %v760, 0.0
        %v762 = vmul.f32 %v750, %v509
        %v763 = vmul.f32 %v751, %v534
        %v764 = vadd.f32 %v762, %v763
        %v765 = vmul.f32 %v748, %v559
        %v766 = vadd.f32 %v764, %v765
        %v767 = vmul.f32 %v749, %v584
        %v768 = vadd.f32 %v766, %v767
        %v769 = vld [vmem:[%s360] sm:$0xff]
        %v770 = vsub.f32 %v768, %v769
        %v771 = vmul.f32 %v770, %v770
        %v772 = vmul.f32 %v768, %v768
        %v773 = vmul.f32 %v750, %v511
        %v774 = vmul.f32 %v751, %v536
        %v775 = vadd.f32 %v773, %v774
        %v776 = vmul.f32 %v748, %v561
        %v777 = vadd.f32 %v775, %v776
        %v778 = vmul.f32 %v749, %v586
        %v779 = vadd.f32 %v777, %v778
        %s780 = scalar_lea.vmem %s360, %s488 [#allocation5]
        %v781 = vld [vmem:[%s780] sm:$0xff]
        %v782 = vsub.f32 %v779, %v781
        %v783 = vmul.f32 %v782, %v782
        %v784 = vadd.f32 %v771, %v783
        %v785 = vmul.f32 %v779, %v779
        %v786 = vadd.f32 %v772, %v785
        %v787 = vmul.f32 %v750, %v514
        %v788 = vmul.f32 %v751, %v539
        %v789 = vadd.f32 %v787, %v788
        %v790 = vmul.f32 %v748, %v564
        %v791 = vadd.f32 %v789, %v790
        %v792 = vmul.f32 %v749, %v589
        %v793 = vadd.f32 %v791, %v792
        %s794 = scalar_lea.vmem %s360, %s491 [#allocation5]
        %v795 = vld [vmem:[%s794] sm:$0xff]
        %v796 = vsub.f32 %v793, %v795
        %v797 = vmul.f32 %v796, %v796
        %v798 = vadd.f32 %v784, %v797
        %v799 = vmul.f32 %v793, %v793
        %v800 = vadd.f32 %v786, %v799
        %v801 = vmul.f32 %v750, %v517
        %v802 = vmul.f32 %v751, %v542
        %v803 = vadd.f32 %v801, %v802
        %v804 = vmul.f32 %v748, %v567
        %v805 = vadd.f32 %v803, %v804
        %v806 = vmul.f32 %v749, %v592
        %v807 = vadd.f32 %v805, %v806
        %s808 = scalar_lea.vmem %s360, %s494 [#allocation5]
        %v809 = vld [vmem:[%s808] sm:$0xff]
        %v810 = vsub.f32 %v807, %v809
        %v811 = vmul.f32 %v810, %v810
        %v812 = vadd.f32 %v798, %v811
        %v813 = vmul.f32 %v807, %v807
        %v814 = vadd.f32 %v800, %v813
        %v815 = vmul.f32 %v750, %v520
        %v816 = vmul.f32 %v751, %v545
        %v817 = vadd.f32 %v815, %v816
        %v818 = vmul.f32 %v748, %v570
        %v819 = vadd.f32 %v817, %v818
        %v820 = vmul.f32 %v749, %v595
        %v821 = vadd.f32 %v819, %v820
        %s822 = scalar_lea.vmem %s360, %s497 [#allocation5]
        %v823 = vld [vmem:[%s822] sm:$0xff]
        %v824 = vsub.f32 %v821, %v823
        %v825 = vmul.f32 %v824, %v824
        %v826 = vadd.f32 %v812, %v825
        %v827 = vmul.f32 %v821, %v821
        %v828 = vadd.f32 %v814, %v827
        %v829 = vmul.f32 %v750, %v523
        %v830 = vmul.f32 %v751, %v548
        %v831 = vadd.f32 %v829, %v830
        %v832 = vmul.f32 %v748, %v573
        %v833 = vadd.f32 %v831, %v832
        %v834 = vmul.f32 %v749, %v598
        %v835 = vadd.f32 %v833, %v834
        %s836 = scalar_lea.vmem %s360, %s500 [#allocation5]
        %v837 = vld [vmem:[%s836] sm:$0xff]
        %v838 = vsub.f32 %v835, %v837
        %v839 = vmul.f32 %v838, %v838
        %v840 = vadd.f32 %v826, %v839
        %v841 = vmul.f32 %v835, %v835
        %v842 = vadd.f32 %v828, %v841
        %v843 = vmul.f32 %v750, %v526
        %v844 = vmul.f32 %v751, %v551
        %v845 = vadd.f32 %v843, %v844
        %v846 = vmul.f32 %v748, %v576
        %v847 = vadd.f32 %v845, %v846
        %v848 = vmul.f32 %v749, %v601
        %v849 = vadd.f32 %v847, %v848
        %s850 = scalar_lea.vmem %s360, %s503 [#allocation5]
        %v851 = vld [vmem:[%s850] sm:$0xff]
        %v852 = vsub.f32 %v849, %v851
        %v853 = vmul.f32 %v852, %v852
        %v854 = vadd.f32 %v840, %v853
        %v855 = vmul.f32 %v849, %v849
        %v856 = vadd.f32 %v842, %v855
        %v857 = vmul.f32 %v750, %v529
        %v858 = vmul.f32 %v751, %v554
        %v859 = vadd.f32 %v857, %v858
        %v860 = vmul.f32 %v748, %v579
        %v861 = vadd.f32 %v859, %v860
        %v862 = vmul.f32 %v749, %v604
        %v863 = vadd.f32 %v861, %v862
        %s864 = scalar_lea.vmem %s360, %s506 [#allocation5]
        %v865 = vld [vmem:[%s864] sm:$0xff]
        %v866 = vsub.f32 %v863, %v865
        %v867 = vmul.f32 %v866, %v866
        %v868 = vadd.f32 %v854, %v867
        %v869 = vmul.f32 %v863, %v863
        %v870 = vadd.f32 %v856, %v869
        %v871 = vmul.f32 %v868, %v754
        %v872 = vsub.f32 %v870, 1.0
        %v873 = vmax.f32 %v872, 0.0
        %v874 = vadd.f32 %v761, %v871
        %v875 = vadd.f32 %v874, %v873
        %v876 = vmul.f32 %v875, %v756
        %v877 = vadd.f32 %v876, 0.0
        %s878 = scalar_lea.vmem %s351, 8 [#allocation2]
        %v879 = vld [vmem:[%s878] sm:$0xff]
        %s880 = sadd.s32 8, 16
        %s881 = scalar_lea.vmem %s351, %s880 [#allocation2]
        %v882 = vld [vmem:[%s881] sm:$0xff]
        %s883 = sadd.s32 8, 32
        %s884 = scalar_lea.vmem %s351, %s883 [#allocation2]
        %v885 = vld [vmem:[%s884] sm:$0xff]
        %s886 = sadd.s32 8, 48
        %s887 = scalar_lea.vmem %s351, %s886 [#allocation2]
        %v888 = vld [vmem:[%s887] sm:$0xff]
        %s889 = sadd.s32 8, 64
        %s890 = scalar_lea.vmem %s351, %s889 [#allocation2]
        %v891 = vld [vmem:[%s890] sm:$0xff]
        %s892 = sadd.s32 8, 80
        %s893 = scalar_lea.vmem %s351, %s892 [#allocation2]
        %v894 = vld [vmem:[%s893] sm:$0xff]
        %s895 = sadd.s32 8, 96
        %s896 = scalar_lea.vmem %s351, %s895 [#allocation2]
        %v897 = vld [vmem:[%s896] sm:$0xff]
        %s898 = sadd.s32 8, 112
        %s899 = scalar_lea.vmem %s351, %s898 [#allocation2]
        %v900 = vld [vmem:[%s899] sm:$0xff]
        %v901 = vmul.f32 %v879, %v509
        %v902 = vmul.f32 %v882, %v511
        %v903 = vadd.f32 %v901, %v902
        %v904 = vmul.f32 %v885, %v514
        %v905 = vadd.f32 %v903, %v904
        %v906 = vmul.f32 %v888, %v517
        %v907 = vadd.f32 %v905, %v906
        %v908 = vmul.f32 %v891, %v520
        %v909 = vadd.f32 %v907, %v908
        %v910 = vmul.f32 %v894, %v523
        %v911 = vadd.f32 %v909, %v910
        %v912 = vmul.f32 %v897, %v526
        %v913 = vadd.f32 %v911, %v912
        %v914 = vmul.f32 %v900, %v529
        %v915 = vadd.f32 %v913, %v914
        %v916 = vadd.f32 %v915, %v532
        %v917 = vmul.f32 %v879, %v534
        %v918 = vmul.f32 %v882, %v536
        %v919 = vadd.f32 %v917, %v918
        %v920 = vmul.f32 %v885, %v539
        %v921 = vadd.f32 %v919, %v920
        %v922 = vmul.f32 %v888, %v542
        %v923 = vadd.f32 %v921, %v922
        %v924 = vmul.f32 %v891, %v545
        %v925 = vadd.f32 %v923, %v924
        %v926 = vmul.f32 %v894, %v548
        %v927 = vadd.f32 %v925, %v926
        %v928 = vmul.f32 %v897, %v551
        %v929 = vadd.f32 %v927, %v928
        %v930 = vmul.f32 %v900, %v554
        %v931 = vadd.f32 %v929, %v930
        %v932 = vadd.f32 %v931, %v557
        %v933 = vmul.f32 %v879, %v559
        %v934 = vmul.f32 %v882, %v561
        %v935 = vadd.f32 %v933, %v934
        %v936 = vmul.f32 %v885, %v564
        %v937 = vadd.f32 %v935, %v936
        %v938 = vmul.f32 %v888, %v567
        %v939 = vadd.f32 %v937, %v938
        %v940 = vmul.f32 %v891, %v570
        %v941 = vadd.f32 %v939, %v940
        %v942 = vmul.f32 %v894, %v573
        %v943 = vadd.f32 %v941, %v942
        %v944 = vmul.f32 %v897, %v576
        %v945 = vadd.f32 %v943, %v944
        %v946 = vmul.f32 %v900, %v579
        %v947 = vadd.f32 %v945, %v946
        %v948 = vadd.f32 %v947, %v582
        %v949 = vmul.f32 %v879, %v584
        %v950 = vmul.f32 %v882, %v586
        %v951 = vadd.f32 %v949, %v950
        %v952 = vmul.f32 %v885, %v589
        %v953 = vadd.f32 %v951, %v952
        %v954 = vmul.f32 %v888, %v592
        %v955 = vadd.f32 %v953, %v954
        %v956 = vmul.f32 %v891, %v595
        %v957 = vadd.f32 %v955, %v956
        %v958 = vmul.f32 %v894, %v598
        %v959 = vadd.f32 %v957, %v958
        %v960 = vmul.f32 %v897, %v601
        %v961 = vadd.f32 %v959, %v960
        %v962 = vmul.f32 %v900, %v604
        %v963 = vadd.f32 %v961, %v962
        %v964 = vadd.f32 %v963, %v607
        %vm965 = vcmp.le.f32.partialorder %v916, %v932
        %v966 = vsel %vm965, %v916, %v932
        %v967 = vsel %vm965, %v932, %v916
        %vm968 = vcmp.le.f32.partialorder %v948, %v964
        %v969 = vsel %vm968, %v948, %v964
        %v970 = vsel %vm968, %v964, %v948
        %vm971 = vcmp.le.f32.partialorder %v966, %v969
        %v972 = vsel %vm971, %v966, %v969
        %v973 = vsel %vm971, %v969, %v966
        %vm974 = vcmp.le.f32.partialorder %v967, %v970
        %v975 = vsel %vm974, %v967, %v970
        %v976 = vsel %vm974, %v970, %v967
        %vm977 = vcmp.le.f32.partialorder %v975, %v973
        %v978 = vsel %vm977, %v975, %v973
        %v979 = vsel %vm977, %v973, %v975
        %v980 = vmul.f32 %v972, %v624
        %v981 = vmul.f32 %v978, %v626
        %v982 = vadd.f32 %v980, %v981
        %v983 = vmul.f32 %v979, %v629
        %v984 = vadd.f32 %v982, %v983
        %v985 = vmul.f32 %v976, %v632
        %v986 = vadd.f32 %v984, %v985
        %v987 = vadd.f32 %v986, %v635
        %v988 = vmul.f32 %v972, %v637
        %v989 = vmul.f32 %v978, %v639
        %v990 = vadd.f32 %v988, %v989
        %v991 = vmul.f32 %v979, %v642
        %v992 = vadd.f32 %v990, %v991
        %v993 = vmul.f32 %v976, %v645
        %v994 = vadd.f32 %v992, %v993
        %v995 = vadd.f32 %v994, %v648
        %v996 = vmul.f32 %v972, %v650
        %v997 = vmul.f32 %v978, %v652
        %v998 = vadd.f32 %v996, %v997
        %v999 = vmul.f32 %v979, %v655
        %v1000 = vadd.f32 %v998, %v999
        %v1001 = vmul.f32 %v976, %v658
        %v1002 = vadd.f32 %v1000, %v1001
        %v1003 = vadd.f32 %v1002, %v661
        %v1004 = vmul.f32 %v972, %v663
        %v1005 = vmul.f32 %v978, %v665
        %v1006 = vadd.f32 %v1004, %v1005
        %v1007 = vmul.f32 %v979, %v668
        %v1008 = vadd.f32 %v1006, %v1007
        %v1009 = vmul.f32 %v976, %v671
        %v1010 = vadd.f32 %v1008, %v1009
        %v1011 = vadd.f32 %v1010, %v674
        %vm1012 = vcmp.le.f32.partialorder %v987, %v995
        %v1013 = vsel %vm1012, %v987, %v995
        %v1014 = vsel %vm1012, %v995, %v987
        %vm1015 = vcmp.le.f32.partialorder %v1003, %v1011
        %v1016 = vsel %vm1015, %v1003, %v1011
        %v1017 = vsel %vm1015, %v1011, %v1003
        %vm1018 = vcmp.le.f32.partialorder %v1013, %v1016
        %v1019 = vsel %vm1018, %v1013, %v1016
        %v1020 = vsel %vm1018, %v1016, %v1013
        %vm1021 = vcmp.le.f32.partialorder %v1014, %v1017
        %v1022 = vsel %vm1021, %v1014, %v1017
        %v1023 = vsel %vm1021, %v1017, %v1014
        %vm1024 = vcmp.le.f32.partialorder %v1022, %v1020
        %v1025 = vsel %vm1024, %v1022, %v1020
        %v1026 = vsel %vm1024, %v1020, %v1022
        %v1027 = vmul.f32 %v1019, %v691
        %v1028 = vmul.f32 %v1025, %v693
        %v1029 = vadd.f32 %v1027, %v1028
        %v1030 = vmul.f32 %v1026, %v696
        %v1031 = vadd.f32 %v1029, %v1030
        %v1032 = vmul.f32 %v1023, %v699
        %v1033 = vadd.f32 %v1031, %v1032
        %v1034 = vadd.f32 %v1033, %v702
        %v1035 = vsel %vm1024, %v693, %v696
        %v1036 = vsel %vm1024, %v696, %v693
        %v1037 = vsel %vm1021, %v1035, %v699
        %v1038 = vsel %vm1021, %v699, %v1035
        %v1039 = vsel %vm1018, %v691, %v1036
        %v1040 = vsel %vm1018, %v1036, %v691
        %v1041 = vsel %vm1015, %v1040, %v1038
        %v1042 = vsel %vm1015, %v1038, %v1040
        %v1043 = vsel %vm1012, %v1039, %v1037
        %v1044 = vsel %vm1012, %v1037, %v1039
        %v1045 = vmul.f32 %v1043, %v624
        %v1046 = vmul.f32 %v1044, %v637
        %v1047 = vadd.f32 %v1045, %v1046
        %v1048 = vmul.f32 %v1041, %v650
        %v1049 = vadd.f32 %v1047, %v1048
        %v1050 = vmul.f32 %v1042, %v663
        %v1051 = vadd.f32 %v1049, %v1050
        %v1052 = vmul.f32 %v1043, %v626
        %v1053 = vmul.f32 %v1044, %v639
        %v1054 = vadd.f32 %v1052, %v1053
        %v1055 = vmul.f32 %v1041, %v652
        %v1056 = vadd.f32 %v1054, %v1055
        %v1057 = vmul.f32 %v1042, %v665
        %v1058 = vadd.f32 %v1056, %v1057
        %v1059 = vmul.f32 %v1043, %v629
        %v1060 = vmul.f32 %v1044, %v642
        %v1061 = vadd.f32 %v1059, %v1060
        %v1062 = vmul.f32 %v1041, %v655
        %v1063 = vadd.f32 %v1061, %v1062
        %v1064 = vmul.f32 %v1042, %v668
        %v1065 = vadd.f32 %v1063, %v1064
        %v1066 = vmul.f32 %v1043, %v632
        %v1067 = vmul.f32 %v1044, %v645
        %v1068 = vadd.f32 %v1066, %v1067
        %v1069 = vmul.f32 %v1041, %v658
        %v1070 = vadd.f32 %v1068, %v1069
        %v1071 = vmul.f32 %v1042, %v671
        %v1072 = vadd.f32 %v1070, %v1071
        %v1073 = vsel %vm977, %v1058, %v1065
        %v1074 = vsel %vm977, %v1065, %v1058
        %v1075 = vsel %vm974, %v1073, %v1072
        %v1076 = vsel %vm974, %v1072, %v1073
        %v1077 = vsel %vm971, %v1051, %v1074
        %v1078 = vsel %vm971, %v1074, %v1051
        %v1079 = vsel %vm968, %v1078, %v1076
        %v1080 = vsel %vm968, %v1076, %v1078
        %v1081 = vsel %vm965, %v1077, %v1075
        %v1082 = vsel %vm965, %v1075, %v1077
        %s1083 = scalar_lea.vmem %s369, 8 [#allocation7]
        %v1084 = vld [vmem:[%s1083] sm:$0xff]
        %s1085 = scalar_lea.vmem %s369, %s880 [#allocation7]
        %v1086 = vld [vmem:[%s1085] sm:$0xff]
        %s1087 = scalar_lea.vmem %s369, %s883 [#allocation7]
        %v1088 = vld [vmem:[%s1087] sm:$0xff]
        %v1089 = vmul.f32 %v1086, 2.0
        %v1090 = vsub.f32 %v1089, 1.0
        %v1091 = vsub.f32 %v1034, %v1084
        %v1092 = vmul.f32 %v1091, %v1090
        %v1093 = vmax.f32 %v1092, 0.0
        %v1094 = vmul.f32 %v1081, %v509
        %v1095 = vmul.f32 %v1082, %v534
        %v1096 = vadd.f32 %v1094, %v1095
        %v1097 = vmul.f32 %v1079, %v559
        %v1098 = vadd.f32 %v1096, %v1097
        %v1099 = vmul.f32 %v1080, %v584
        %v1100 = vadd.f32 %v1098, %v1099
        %s1101 = scalar_lea.vmem %s360, 8 [#allocation5]
        %v1102 = vld [vmem:[%s1101] sm:$0xff]
        %v1103 = vsub.f32 %v1100, %v1102
        %v1104 = vmul.f32 %v1103, %v1103
        %v1105 = vmul.f32 %v1100, %v1100
        %v1106 = vmul.f32 %v1081, %v511
        %v1107 = vmul.f32 %v1082, %v536
        %v1108 = vadd.f32 %v1106, %v1107
        %v1109 = vmul.f32 %v1079, %v561
        %v1110 = vadd.f32 %v1108, %v1109
        %v1111 = vmul.f32 %v1080, %v586
        %v1112 = vadd.f32 %v1110, %v1111
        %s1113 = scalar_lea.vmem %s360, %s880 [#allocation5]
        %v1114 = vld [vmem:[%s1113] sm:$0xff]
        %v1115 = vsub.f32 %v1112, %v1114
        %v1116 = vmul.f32 %v1115, %v1115
        %v1117 = vadd.f32 %v1104, %v1116
        %v1118 = vmul.f32 %v1112, %v1112
        %v1119 = vadd.f32 %v1105, %v1118
        %v1120 = vmul.f32 %v1081, %v514
        %v1121 = vmul.f32 %v1082, %v539
        %v1122 = vadd.f32 %v1120, %v1121
        %v1123 = vmul.f32 %v1079, %v564
        %v1124 = vadd.f32 %v1122, %v1123
        %v1125 = vmul.f32 %v1080, %v589
        %v1126 = vadd.f32 %v1124, %v1125
        %s1127 = scalar_lea.vmem %s360, %s883 [#allocation5]
        %v1128 = vld [vmem:[%s1127] sm:$0xff]
        %v1129 = vsub.f32 %v1126, %v1128
        %v1130 = vmul.f32 %v1129, %v1129
        %v1131 = vadd.f32 %v1117, %v1130
        %v1132 = vmul.f32 %v1126, %v1126
        %v1133 = vadd.f32 %v1119, %v1132
        %v1134 = vmul.f32 %v1081, %v517
        %v1135 = vmul.f32 %v1082, %v542
        %v1136 = vadd.f32 %v1134, %v1135
        %v1137 = vmul.f32 %v1079, %v567
        %v1138 = vadd.f32 %v1136, %v1137
        %v1139 = vmul.f32 %v1080, %v592
        %v1140 = vadd.f32 %v1138, %v1139
        %s1141 = scalar_lea.vmem %s360, %s886 [#allocation5]
        %v1142 = vld [vmem:[%s1141] sm:$0xff]
        %v1143 = vsub.f32 %v1140, %v1142
        %v1144 = vmul.f32 %v1143, %v1143
        %v1145 = vadd.f32 %v1131, %v1144
        %v1146 = vmul.f32 %v1140, %v1140
        %v1147 = vadd.f32 %v1133, %v1146
        %v1148 = vmul.f32 %v1081, %v520
        %v1149 = vmul.f32 %v1082, %v545
        %v1150 = vadd.f32 %v1148, %v1149
        %v1151 = vmul.f32 %v1079, %v570
        %v1152 = vadd.f32 %v1150, %v1151
        %v1153 = vmul.f32 %v1080, %v595
        %v1154 = vadd.f32 %v1152, %v1153
        %s1155 = scalar_lea.vmem %s360, %s889 [#allocation5]
        %v1156 = vld [vmem:[%s1155] sm:$0xff]
        %v1157 = vsub.f32 %v1154, %v1156
        %v1158 = vmul.f32 %v1157, %v1157
        %v1159 = vadd.f32 %v1145, %v1158
        %v1160 = vmul.f32 %v1154, %v1154
        %v1161 = vadd.f32 %v1147, %v1160
        %v1162 = vmul.f32 %v1081, %v523
        %v1163 = vmul.f32 %v1082, %v548
        %v1164 = vadd.f32 %v1162, %v1163
        %v1165 = vmul.f32 %v1079, %v573
        %v1166 = vadd.f32 %v1164, %v1165
        %v1167 = vmul.f32 %v1080, %v598
        %v1168 = vadd.f32 %v1166, %v1167
        %s1169 = scalar_lea.vmem %s360, %s892 [#allocation5]
        %v1170 = vld [vmem:[%s1169] sm:$0xff]
        %v1171 = vsub.f32 %v1168, %v1170
        %v1172 = vmul.f32 %v1171, %v1171
        %v1173 = vadd.f32 %v1159, %v1172
        %v1174 = vmul.f32 %v1168, %v1168
        %v1175 = vadd.f32 %v1161, %v1174
        %v1176 = vmul.f32 %v1081, %v526
        %v1177 = vmul.f32 %v1082, %v551
        %v1178 = vadd.f32 %v1176, %v1177
        %v1179 = vmul.f32 %v1079, %v576
        %v1180 = vadd.f32 %v1178, %v1179
        %v1181 = vmul.f32 %v1080, %v601
        %v1182 = vadd.f32 %v1180, %v1181
        %s1183 = scalar_lea.vmem %s360, %s895 [#allocation5]
        %v1184 = vld [vmem:[%s1183] sm:$0xff]
        %v1185 = vsub.f32 %v1182, %v1184
        %v1186 = vmul.f32 %v1185, %v1185
        %v1187 = vadd.f32 %v1173, %v1186
        %v1188 = vmul.f32 %v1182, %v1182
        %v1189 = vadd.f32 %v1175, %v1188
        %v1190 = vmul.f32 %v1081, %v529
        %v1191 = vmul.f32 %v1082, %v554
        %v1192 = vadd.f32 %v1190, %v1191
        %v1193 = vmul.f32 %v1079, %v579
        %v1194 = vadd.f32 %v1192, %v1193
        %v1195 = vmul.f32 %v1080, %v604
        %v1196 = vadd.f32 %v1194, %v1195
        %s1197 = scalar_lea.vmem %s360, %s898 [#allocation5]
        %v1198 = vld [vmem:[%s1197] sm:$0xff]
        %v1199 = vsub.f32 %v1196, %v1198
        %v1200 = vmul.f32 %v1199, %v1199
        %v1201 = vadd.f32 %v1187, %v1200
        %v1202 = vmul.f32 %v1196, %v1196
        %v1203 = vadd.f32 %v1189, %v1202
        %v1204 = vmul.f32 %v1201, %v1086
        %v1205 = vsub.f32 %v1203, 1.0
        %v1206 = vmax.f32 %v1205, 0.0
        %v1207 = vadd.f32 %v1093, %v1204
        %v1208 = vadd.f32 %v1207, %v1206
        %v1209 = vmul.f32 %v1208, %v1088
        %v1210 = vadd.f32 %v877, %v1209
        %v1211 = vld [vmem:[%s420] sm:$0xff]
        %v1212 = vadd.f32 %v1211, %v1210
        %1213 = vst [vmem:[%s420] sm:$0xff] %v1212
        %p1214 = scmp.lt.s32.totalorder %s26, 1
        %s1215 = scalar_select %p1214, %s26, 1
        %s1216 = smul.addr %s1215, 8
        %s1217 = scalar_lea.vmem %s4, %s1216
        // Predicated region
        $region57: #{_loss.1} parent=35 // pred_check
          %p1218 = pneg %p163
        $region58: #{_loss.1} parent=35 // pred_check_branch
          %1220 = sbr.rel (%p1218) target = $region60
        $region59: #{_loss.1} parent=35 // pred_region
          _
        $region60: #{_loss.1} parent=35 // pred_fallthru
          _
      $region36: #{_loss.1} parent=5 // pred_fallthru
        _
      %p1221 = scmp.le.s32.totalorder 2, %s17
      // Predicated region
      $region61: #{_loss.1} parent=5 // pred_check
        %p1222 = pneg %p1221
      $region62: #{_loss.1} parent=5 // pred_check_branch
        %1224 = sbr.rel (%p1222) target = $region64
      $region63: #{_loss.1} parent=5 // pred_region
        %s1225 = ssub.s32 %s17, 2
        // Predicated region
        $region65: #{_loss.1} parent=63 // pred_check
          %p1226 = pneg %p169
        $region66: #{_loss.1} parent=63 // pred_check_branch
          %1228 = sbr.rel (%p1226) target = $region68
        $region67: #{_loss.1} parent=63 // pred_region
          %p1229 = scmp.lt.s32.totalorder %s28, 1
          %s1230 = scalar_select %p1229, %s28, 1
          %s1231 = smul.addr %s1230, 8
          %s1232 = scalar_lea.vmem %s4, %s1231
        $region68: #{_loss.1} parent=63 // pred_fallthru
          _
      $region64: #{_loss.1} parent=5 // pred_fallthru
        _
    $region6: #{_loss.1} parent=1 // loop_footer
      %s21 = sadd.s32 1, %s17
    $region7: #{_loss.1} parent=1 // loop_footer_branch
      %16 = sbr.rel target = $region3
    $region8: #{_loss.1} parent=1 // loop_exit
      _
    %1233 = vsyncpa [#allocation3], 1
    %s1234 = scalar_lea.sflag [#allocation3], 1
    %1235 = vsyncpa %s1234, 1
    %1236 = vsyncpa [#allocation6], 1
    %s1237 = scalar_lea.sflag [#allocation6], 1
    %1238 = vsyncpa %s1237, 1
    %1239 = vsyncpa [#allocation4], 1
    %s1240 = scalar_lea.sflag [#allocation4], 1
    %1241 = vsyncpa %s1240, 1

</llo_original>
